<compile_context>
chip_gen: v7x
topology: tpu7x:2x2x1
jax: 0.10.0
libtpu: 0.0.40
codegen_flags: <defaults>
</compile_context>

<pallas_src>
import numpy as np
import jax
import jax.numpy as jnp
from jax.experimental import pallas as pl
from jax.experimental.pallas import tpu as pltpu

EPS = 1e-5


def _make_kernel(N, H, W, Cin, Cout):
    R = N * H
    L = W * Cout
    inv_cnt = 1.0 / float(N * H * W)

    def kernel(x_ref, w1_ref, w2_ref, sel2_ref, selt2_ref, sel_ref, selt_ref,
               g1s_ref, b1s_ref, g2_ref, b2_ref, out_ref):
        f32 = jnp.float32
        cdt = w1_ref.dtype                       # conv matmul dtype (bf16 / f32)

        # Vertical-tap boundary masks, computed once and shared by conv1/conv2.
        # Row r of the (N*H, .) layout sits at image row h = r % H; the "up"
        # tap is invalid at h == 0 and the "down" tap at h == H-1.
        h_pos = jax.lax.broadcasted_iota(jnp.int32, (R, 1), 0) % H
        not_top = h_pos != 0
        not_bot = h_pos != (H - 1)

        def conv3(y, w_ref):
            # 3x3 conv as 3 accumulated matmuls (one per vertical tap).
            # Horizontal taps + W zero-padding are folded into each weight
            # block; vertical taps come from XLU sublane rolls + masks
            # (no MXU shift matmuls, no lane-offset concat).
            up = jnp.where(not_top, pltpu.roll(y, shift=1, axis=0), 0.0)      # y[r-1]
            dn = jnp.where(not_bot, pltpu.roll(y, shift=R - 1, axis=0), 0.0)  # y[r+1]
            return (jnp.dot(up.astype(cdt), w_ref[0], preferred_element_type=f32)
                    + jnp.dot(y.astype(cdt), w_ref[1], preferred_element_type=f32)
                    + jnp.dot(dn.astype(cdt), w_ref[2], preferred_element_type=f32))

        def bn(y, sel, selt, g, b):
            # Training-mode BatchNorm, single pass, all in f32: sum and
            # sum-of-squares reduced together; per-channel stats extracted and
            # broadcast back through tiny 0/1 selector matmuls (no lane<->
            # sublane reshapes, no second elementwise pass).
            col = jnp.concatenate(
                [jnp.sum(y, axis=0, keepdims=True),
                 jnp.sum(y * y, axis=0, keepdims=True)], axis=0)        # (2, width)
            sums = jnp.dot(col, sel, preferred_element_type=f32)        # (2, C)
            mean = sums[0:1, :] * inv_cnt
            var = sums[1:2, :] * inv_cnt - mean * mean                  # biased var
            scale = g * jax.lax.rsqrt(var + EPS)
            bias = b - mean * scale
            sb = jnp.dot(jnp.concatenate([scale, bias], axis=0), selt,
                         preferred_element_type=f32)                    # (2, width)
            return y * sb[0:1, :] + sb[1:2, :]

        x = x_ref[...]

        # ---- conv1 (3x3) with the 1x1 skip conv fused as extra output cols ----
        c1s = conv3(x, w1_ref)                                          # (R, 2L)

        # ---- bn1 + skip-BN: one fused statistics pass, relu on conv1 half ----
        y1 = bn(c1s, sel2_ref[...], selt2_ref[...], g1s_ref[...], b1s_ref[...])
        h1 = jnp.maximum(y1[:, :L], 0.0)                                # (R, L)
        skb = y1[:, L:]                                                 # (R, L)

        # ---- conv2 (3x3) + bn2 ----
        c2 = conv3(h1, w2_ref)                                          # (R, L)
        y2 = bn(c2, sel_ref[...], selt_ref[...], g2_ref[...], b2_ref[...])

        # ---- final relu, lane-dense full-width store (last dim = W*Cout) ----
        out_ref[...] = jnp.maximum(y2 + skb, 0.0)

    return kernel


def _toeplitz_blocks(w_hwio, W):
    """(3,3,Cin,Cout) HWIO kernel -> (3, W*Cin, W*Cout): one block-Toeplitz
    matrix per vertical tap; horizontal taps + W zero-padding folded in."""
    # TODO(synk): for large W, switch the horizontal taps to lane rolls + masks
    # so K stays 9*Cin instead of 3*W*Cin (Toeplitz K is wasteful past W~64).
    w = np.asarray(w_hwio, np.float32)
    Cin, Cout = w.shape[2], w.shape[3]
    blocks = []
    for ky in range(3):
        blk = np.zeros((W * Cin, W * Cout), np.float32)
        for kx, dx in enumerate((-1, 0, 1)):
            T = np.eye(W, k=-dx, dtype=np.float32)  # T[w_in, w]=1 iff w_in=w+dx
            blk += np.einsum("uw,co->ucwo", T, w[ky, kx]).reshape(W * Cin, W * Cout)
        blocks.append(blk)
    return np.stack(blocks)


def prepare_params(params, W, conv_dtype=jnp.bfloat16):
    """One-time parameter preprocessing, hoisted out of the per-call path."""
    Cin, Cout = params["w1"].shape[2], params["w1"].shape[3]
    L = W * Cout

    # conv1 weights with the 1x1 skip conv fused in as extra output columns;
    # the skip only contributes on the center vertical tap.
    c1 = _toeplitz_blocks(params["w1"], W)                       # (3, W*Cin, L)
    skip = np.einsum("uw,co->ucwo", np.eye(W, dtype=np.float32),
                     np.asarray(params["wskip"], np.float32)).reshape(W * Cin, L)
    w1s = np.zeros((3, W * Cin, 2 * L), np.float32)
    w1s[:, :, :L] = c1
    w1s[1, :, L:] = skip
    w2s = _toeplitz_blocks(params["w2"], W)                      # (3, L, L)

    # BN lane<->channel selectors, plus block-diagonal versions covering the
    # fused conv1|skip output (single statistics pass for bn1 + skip-BN).
    sel = np.tile(np.eye(Cout, dtype=np.float32), (W, 1))        # (L, Cout)
    selt = np.tile(np.eye(Cout, dtype=np.float32), (1, W))       # (Cout, L)
    sel2 = np.zeros((2 * L, 2 * Cout), np.float32)
    sel2[:L, :Cout] = sel
    sel2[L:, Cout:] = sel
    selt2 = np.zeros((2 * Cout, 2 * L), np.float32)
    selt2[:Cout, :L] = selt
    selt2[Cout:, L:] = selt

    return {
        "w1": jnp.asarray(w1s).astype(conv_dtype),
        "w2": jnp.asarray(w2s).astype(conv_dtype),
        "sel": jnp.asarray(sel), "selt": jnp.asarray(selt),
        "sel2": jnp.asarray(sel2), "selt2": jnp.asarray(selt2),
        "g1s": jnp.concatenate([params["g1"], params["gs"]], axis=1).astype(jnp.float32),
        "b1s": jnp.concatenate([params["b1"], params["bs"]], axis=1).astype(jnp.float32),
        "g2": params["g2"].astype(jnp.float32),
        "b2": params["b2"].astype(jnp.float32),
    }


@jax.jit
def residual_forward(x_nchw, prep):
    # Accepts NCHW (PyTorch convention); runs the kernel on a lane-dense
    # (N*H, W*C) layout and returns NCHW.
    N, Cin, H, W = x_nchw.shape
    Cout = prep["g2"].shape[-1]
    R, L = N * H, W * Cout

    x2d = jnp.transpose(x_nchw, (0, 2, 3, 1)).astype(jnp.float32).reshape(R, W * Cin)

    vmem = pl.BlockSpec(memory_space=pltpu.MemorySpace.VMEM)
    out2d = pl.pallas_call(
        _make_kernel(N, H, W, Cin, Cout),
        out_shape=jax.ShapeDtypeStruct((R, L), jnp.float32),
        in_specs=[vmem] * 11,
        out_specs=vmem,
    )(x2d, prep["w1"], prep["w2"], prep["sel2"], prep["selt2"],
      prep["sel"], prep["selt"], prep["g1s"], prep["b1s"],
      prep["g2"], prep["b2"])

    return jnp.transpose(out2d.reshape(N, H, W, Cout), (0, 3, 1, 2))


def reference_forward(x_nchw, params):
    """Pure-JAX f32 reference mirroring the PyTorch module (training-mode BN)."""
    x = jnp.transpose(x_nchw, (0, 2, 3, 1)).astype(jnp.float32)

    def conv3(h, w):
        return jax.lax.conv_general_dilated(
            h, w, window_strides=(1, 1), padding=((1, 1), (1, 1)),
            dimension_numbers=("NHWC", "HWIO", "NHWC"))

    def bn(h, g, b):
        m = jnp.mean(h, axis=(0, 1, 2))
        v = jnp.mean((h - m) ** 2, axis=(0, 1, 2))
        return (h - m) * jax.lax.rsqrt(v + EPS) * g.reshape(-1) + b.reshape(-1)

    h = jax.nn.relu(bn(conv3(x, params["w1"]), params["g1"], params["b1"]))
    h = bn(conv3(h, params["w2"]), params["g2"], params["b2"])
    sk = bn(jnp.einsum("nhwc,co->nhwo", x, params["wskip"]),
            params["gs"], params["bs"])
    return jnp.transpose(jax.nn.relu(h + sk), (0, 3, 1, 2))


def make_params(key, inp_dim, out_dim):
    ks = jax.random.split(key, 9)
    return {
        "w1": 0.1 * jax.random.normal(ks[0], (3, 3, inp_dim, out_dim), jnp.float32),
        "w2": 0.1 * jax.random.normal(ks[1], (3, 3, out_dim, out_dim), jnp.float32),
        "wskip": 0.1 * jax.random.normal(ks[2], (inp_dim, out_dim), jnp.float32),
        "g1": 1.0 + 0.1 * jax.random.normal(ks[3], (1, out_dim), jnp.float32),
        "b1": 0.1 * jax.random.normal(ks[4], (1, out_dim), jnp.float32),
        "g2": 1.0 + 0.1 * jax.random.normal(ks[5], (1, out_dim), jnp.float32),
        "b2": 0.1 * jax.random.normal(ks[6], (1, out_dim), jnp.float32),
        "gs": 1.0 + 0.1 * jax.random.normal(ks[7], (1, out_dim), jnp.float32),
        "bs": 0.1 * jax.random.normal(ks[8], (1, out_dim), jnp.float32),
    }


if __name__ == "__main__":
    key = jax.random.PRNGKey(0)
    kx, kp = jax.random.split(key)

    N, inp_dim, out_dim, H, W = 2, 4, 8, 16, 16
    x = jax.random.normal(kx, (N, inp_dim, H, W), jnp.float32)   # NCHW, like PyTorch
    params = make_params(kp, inp_dim, out_dim)

    ref = jax.block_until_ready(reference_forward(x, params))

    # Exact-semantics check: f32 conv matmuls match the f32 reference tightly.
    prep_f32 = prepare_params(params, W, conv_dtype=jnp.float32)
    out_f32 = jax.block_until_ready(residual_forward(x, prep_f32))
    assert out_f32.shape == (N, out_dim, H, W), out_f32.shape
    assert jnp.allclose(out_f32, ref, atol=1e-4, rtol=1e-4), (
        float(jnp.max(jnp.abs(out_f32 - ref))))

    # Default fast path: bf16 conv matmul operands (f32 accumulation, f32 BN).
    # Deviation vs. the full-f32 reference is bounded by bf16 input rounding.
    prep_bf16 = prepare_params(params, W)   # conv_dtype = bf16
    out_bf16 = jax.block_until_ready(residual_forward(x, prep_bf16))
    assert out_bf16.shape == (N, out_dim, H, W), out_bf16.shape
    assert jnp.allclose(out_bf16, ref, atol=5e-2, rtol=5e-2), (
        float(jnp.max(jnp.abs(out_bf16 - ref))))

    print("KERNEL_OK")
</pallas_src>

<mosaic_0001>
module attributes {stable_mosaic.version = 11 : i64} {
  func.func @kernel(%arg0: memref<32x64xf32, #tpu.memory_space<vmem>>, %arg1: memref<3x64x256xf32, #tpu.memory_space<vmem>>, %arg2: memref<3x128x128xf32, #tpu.memory_space<vmem>>, %arg3: memref<256x16xf32, #tpu.memory_space<vmem>>, %arg4: memref<16x256xf32, #tpu.memory_space<vmem>>, %arg5: memref<128x8xf32, #tpu.memory_space<vmem>>, %arg6: memref<8x128xf32, #tpu.memory_space<vmem>>, %arg7: memref<1x16xf32, #tpu.memory_space<vmem>>, %arg8: memref<1x16xf32, #tpu.memory_space<vmem>>, %arg9: memref<1x8xf32, #tpu.memory_space<vmem>>, %arg10: memref<1x8xf32, #tpu.memory_space<vmem>>, %arg11: memref<32x128xf32, #tpu.memory_space<vmem>>) attributes {dimension_semantics = [], scalar_prefetch = 0 : i64, scratch_operands = 0 : i64, tpu.core_type = #tpu.core_type<tc>} {
    %0 = tpu.iota {dimensions = array<i32: 0>} : vector<32x1xi32>
    %c16_i32 = arith.constant 16 : i32
    %c0_i32 = arith.constant 0 : i32
    %1 = arith.cmpi eq, %c16_i32, %c0_i32 : i32
    %c1_i32 = arith.constant 1 : i32
    %2 = arith.select %1, %c1_i32, %c16_i32 : i32
    %3 = vector.broadcast %2 : i32 to vector<32x1xi32>
    %4 = arith.remsi %0, %3 : vector<32x1xi32>
    %c0_i32_0 = arith.constant 0 : i32
    %5 = vector.broadcast %c0_i32_0 : i32 to vector<32x1xi32>
    %6 = arith.cmpi ne, %4, %5 : vector<32x1xi32>
    %c0_i32_1 = arith.constant 0 : i32
    %7 = vector.broadcast %c0_i32_1 : i32 to vector<32x1xi32>
    %8 = arith.cmpi slt, %4, %7 : vector<32x1xi32>
    %c0_i32_2 = arith.constant 0 : i32
    %9 = arith.cmpi slt, %2, %c0_i32_2 : i32
    %10 = vector.broadcast %9 : i1 to vector<32x1xi1>
    %11 = vector.broadcast %10 : vector<32x1xi1> to vector<32x1xi1>
    %12 = arith.xori %8, %11 : vector<32x1xi1>
    %13 = arith.andi %12, %6 : vector<32x1xi1>
    %14 = vector.broadcast %2 : i32 to vector<32x1xi32>
    %15 = arith.addi %4, %14 : vector<32x1xi32>
    %16 = arith.select %13, %15, %4 : vector<32x1xi1>, vector<32x1xi32>
    %c0_i32_3 = arith.constant 0 : i32
    %17 = vector.broadcast %c0_i32_3 : i32 to vector<32x1xi32>
    %18 = arith.cmpi ne, %16, %17 : vector<32x1xi32>
    %c15_i32 = arith.constant 15 : i32
    %19 = vector.broadcast %c15_i32 : i32 to vector<32x1xi32>
    %20 = arith.cmpi ne, %16, %19 : vector<32x1xi32>
    %c0 = arith.constant 0 : index
    %c0_4 = arith.constant 0 : index
    %21 = vector.load %arg0[%c0, %c0_4] : memref<32x64xf32, #tpu.memory_space<vmem>>, vector<32x64xf32>
    %c1_i32_5 = arith.constant 1 : i32
    %22 = tpu.dynamic_rotate %21 by %c1_i32_5 dim 0 : vector<32x64xf32>, i32 -> vector<32x64xf32>
    %cst = arith.constant 0.000000e+00 : f32
    %23 = vector.shape_cast %18 : vector<32x1xi1> to vector<32x1xi1>
    %24 = vector.broadcast %23 : vector<32x1xi1> to vector<32x64xi1>
    %25 = vector.broadcast %cst : f32 to vector<32x64xf32>
    %26 = arith.select %24, %22, %25 : vector<32x64xi1>, vector<32x64xf32>
    %c31_i32 = arith.constant 31 : i32
    %27 = tpu.dynamic_rotate %21 by %c31_i32 dim 0 : vector<32x64xf32>, i32 -> vector<32x64xf32>
    %cst_6 = arith.constant 0.000000e+00 : f32
    %28 = vector.shape_cast %20 : vector<32x1xi1> to vector<32x1xi1>
    %29 = vector.broadcast %28 : vector<32x1xi1> to vector<32x64xi1>
    %30 = vector.broadcast %cst_6 : f32 to vector<32x64xf32>
    %31 = arith.select %29, %27, %30 : vector<32x64xi1>, vector<32x64xf32>
    %c0_7 = arith.constant 0 : index
    %c0_8 = arith.constant 0 : index
    %c0_9 = arith.constant 0 : index
    %32 = vector.load %arg1[%c0_7, %c0_8, %c0_9] : memref<3x64x256xf32, #tpu.memory_space<vmem>>, vector<1x64x256xf32>
    %33 = vector.shape_cast %32 : vector<1x64x256xf32> to vector<64x256xf32>
    %cst_10 = arith.constant dense<0.000000e+00> : vector<32x256xf32>
    %34 = tpu.matmul %26, %33, %cst_10 {dimension_numbers = #tpu.dot_dimension_numbers<[1], [0], [0], [1], [0, 0, 1, 1], [], []>} : vector<32x64xf32>, vector<64x256xf32>, vector<32x256xf32> -> vector<32x256xf32>
    %c1 = arith.constant 1 : index
    %c0_11 = arith.constant 0 : index
    %c0_12 = arith.constant 0 : index
    %35 = vector.load %arg1[%c1, %c0_11, %c0_12] : memref<3x64x256xf32, #tpu.memory_space<vmem>>, vector<1x64x256xf32>
    %36 = vector.shape_cast %35 : vector<1x64x256xf32> to vector<64x256xf32>
    %cst_13 = arith.constant dense<0.000000e+00> : vector<32x256xf32>
    %37 = tpu.matmul %21, %36, %cst_13 {dimension_numbers = #tpu.dot_dimension_numbers<[1], [0], [0], [1], [0, 0, 1, 1], [], []>} : vector<32x64xf32>, vector<64x256xf32>, vector<32x256xf32> -> vector<32x256xf32>
    %38 = arith.addf %34, %37 : vector<32x256xf32>
    %c2 = arith.constant 2 : index
    %c0_14 = arith.constant 0 : index
    %c0_15 = arith.constant 0 : index
    %39 = vector.load %arg1[%c2, %c0_14, %c0_15] : memref<3x64x256xf32, #tpu.memory_space<vmem>>, vector<1x64x256xf32>
    %40 = vector.shape_cast %39 : vector<1x64x256xf32> to vector<64x256xf32>
    %cst_16 = arith.constant dense<0.000000e+00> : vector<32x256xf32>
    %41 = tpu.matmul %31, %40, %cst_16 {dimension_numbers = #tpu.dot_dimension_numbers<[1], [0], [0], [1], [0, 0, 1, 1], [], []>} : vector<32x64xf32>, vector<64x256xf32>, vector<32x256xf32> -> vector<32x256xf32>
    %42 = arith.addf %38, %41 : vector<32x256xf32>
    %c0_17 = arith.constant 0 : index
    %c0_18 = arith.constant 0 : index
    %43 = vector.load %arg3[%c0_17, %c0_18] : memref<256x16xf32, #tpu.memory_space<vmem>>, vector<256x16xf32>
    %c0_19 = arith.constant 0 : index
    %c0_20 = arith.constant 0 : index
    %44 = vector.load %arg4[%c0_19, %c0_20] : memref<16x256xf32, #tpu.memory_space<vmem>>, vector<16x256xf32>
    %c0_21 = arith.constant 0 : index
    %c0_22 = arith.constant 0 : index
    %45 = vector.load %arg7[%c0_21, %c0_22] : memref<1x16xf32, #tpu.memory_space<vmem>>, vector<1x16xf32>
    %c0_23 = arith.constant 0 : index
    %c0_24 = arith.constant 0 : index
    %46 = vector.load %arg8[%c0_23, %c0_24] : memref<1x16xf32, #tpu.memory_space<vmem>>, vector<1x16xf32>
    %cst_25 = arith.constant dense<0.000000e+00> : vector<256xf32>
    %47 = vector.multi_reduction <add>, %42, %cst_25 [0] : vector<32x256xf32> to vector<256xf32>
    %48 = vector.shape_cast %47 : vector<256xf32> to vector<1x256xf32>
    %49 = arith.mulf %42, %42 : vector<32x256xf32>
    %cst_26 = arith.constant dense<0.000000e+00> : vector<256xf32>
    %50 = vector.multi_reduction <add>, %49, %cst_26 [0] : vector<32x256xf32> to vector<256xf32>
    %51 = vector.shape_cast %50 : vector<256xf32> to vector<1x256xf32>
    %52 = tpu.concatenate %48, %51 in 0 : vector<1x256xf32>, vector<1x256xf32> -> vector<2x256xf32>
    %cst_27 = arith.constant dense<0.000000e+00> : vector<2x16xf32>
    %53 = tpu.matmul %52, %43, %cst_27 {dimension_numbers = #tpu.dot_dimension_numbers<[1], [0], [0], [1], [0, 0, 1, 1], [], []>} : vector<2x256xf32>, vector<256x16xf32>, vector<2x16xf32> -> vector<2x16xf32>
    %54 = vector.extract_strided_slice %53 {offsets = [0, 0], sizes = [1, 16], strides = [1, 1]} : vector<2x16xf32> to vector<1x16xf32>
    %cst_28 = arith.constant 0.001953125 : f32
    %55 = vector.broadcast %cst_28 : f32 to vector<1x16xf32>
    %56 = arith.mulf %54, %55 : vector<1x16xf32>
    %57 = vector.extract_strided_slice %53 {offsets = [1, 0], sizes = [1, 16], strides = [1, 1]} : vector<2x16xf32> to vector<1x16xf32>
    %cst_29 = arith.constant 0.001953125 : f32
    %58 = vector.broadcast %cst_29 : f32 to vector<1x16xf32>
    %59 = arith.mulf %57, %58 : vector<1x16xf32>
    %60 = arith.mulf %56, %56 : vector<1x16xf32>
    %61 = arith.subf %59, %60 : vector<1x16xf32>
    %cst_30 = arith.constant 9.99999974E-6 : f32
    %62 = vector.broadcast %cst_30 : f32 to vector<1x16xf32>
    %63 = arith.addf %61, %62 : vector<1x16xf32>
    %64 = math.rsqrt %63 : vector<1x16xf32>
    %65 = arith.mulf %45, %64 : vector<1x16xf32>
    %66 = arith.mulf %56, %65 : vector<1x16xf32>
    %67 = arith.subf %46, %66 : vector<1x16xf32>
    %68 = tpu.concatenate %65, %67 in 0 : vector<1x16xf32>, vector<1x16xf32> -> vector<2x16xf32>
    %cst_31 = arith.constant dense<0.000000e+00> : vector<2x256xf32>
    %69 = tpu.matmul %68, %44, %cst_31 {dimension_numbers = #tpu.dot_dimension_numbers<[1], [0], [0], [1], [0, 0, 1, 1], [], []>} : vector<2x16xf32>, vector<16x256xf32>, vector<2x256xf32> -> vector<2x256xf32>
    %70 = vector.extract_strided_slice %69 {offsets = [0, 0], sizes = [1, 256], strides = [1, 1]} : vector<2x256xf32> to vector<1x256xf32>
    %71 = vector.broadcast %70 : vector<1x256xf32> to vector<32x256xf32>
    %72 = arith.mulf %42, %71 : vector<32x256xf32>
    %73 = vector.extract_strided_slice %69 {offsets = [1, 0], sizes = [1, 256], strides = [1, 1]} : vector<2x256xf32> to vector<1x256xf32>
    %74 = vector.broadcast %73 : vector<1x256xf32> to vector<32x256xf32>
    %75 = arith.addf %72, %74 : vector<32x256xf32>
    %76 = vector.extract_strided_slice %75 {offsets = [0, 0], sizes = [32, 128], strides = [1, 1]} : vector<32x256xf32> to vector<32x128xf32>
    %cst_32 = arith.constant 0.000000e+00 : f32
    %77 = vector.broadcast %cst_32 : f32 to vector<32x128xf32>
    %78 = arith.maximumf %76, %77 : vector<32x128xf32>
    %79 = vector.extract_strided_slice %75 {offsets = [0, 128], sizes = [32, 128], strides = [1, 1]} : vector<32x256xf32> to vector<32x128xf32>
    %c1_i32_33 = arith.constant 1 : i32
    %80 = tpu.dynamic_rotate %78 by %c1_i32_33 dim 0 : vector<32x128xf32>, i32 -> vector<32x128xf32>
    %cst_34 = arith.constant 0.000000e+00 : f32
    %81 = vector.shape_cast %18 : vector<32x1xi1> to vector<32x1xi1>
    %82 = vector.broadcast %81 : vector<32x1xi1> to vector<32x128xi1>
    %83 = vector.broadcast %cst_34 : f32 to vector<32x128xf32>
    %84 = arith.select %82, %80, %83 : vector<32x128xi1>, vector<32x128xf32>
    %c31_i32_35 = arith.constant 31 : i32
    %85 = tpu.dynamic_rotate %78 by %c31_i32_35 dim 0 : vector<32x128xf32>, i32 -> vector<32x128xf32>
    %cst_36 = arith.constant 0.000000e+00 : f32
    %86 = vector.shape_cast %20 : vector<32x1xi1> to vector<32x1xi1>
    %87 = vector.broadcast %86 : vector<32x1xi1> to vector<32x128xi1>
    %88 = vector.broadcast %cst_36 : f32 to vector<32x128xf32>
    %89 = arith.select %87, %85, %88 : vector<32x128xi1>, vector<32x128xf32>
    %c0_37 = arith.constant 0 : index
    %c0_38 = arith.constant 0 : index
    %c0_39 = arith.constant 0 : index
    %90 = vector.load %arg2[%c0_37, %c0_38, %c0_39] : memref<3x128x128xf32, #tpu.memory_space<vmem>>, vector<1x128x128xf32>
    %91 = vector.shape_cast %90 : vector<1x128x128xf32> to vector<128x128xf32>
    %cst_40 = arith.constant dense<0.000000e+00> : vector<32x128xf32>
    %92 = tpu.matmul %84, %91, %cst_40 {dimension_numbers = #tpu.dot_dimension_numbers<[1], [0], [0], [1], [0, 0, 1, 1], [], []>} : vector<32x128xf32>, vector<128x128xf32>, vector<32x128xf32> -> vector<32x128xf32>
    %c1_41 = arith.constant 1 : index
    %c0_42 = arith.constant 0 : index
    %c0_43 = arith.constant 0 : index
    %93 = vector.load %arg2[%c1_41, %c0_42, %c0_43] : memref<3x128x128xf32, #tpu.memory_space<vmem>>, vector<1x128x128xf32>
    %94 = vector.shape_cast %93 : vector<1x128x128xf32> to vector<128x128xf32>
    %cst_44 = arith.constant dense<0.000000e+00> : vector<32x128xf32>
    %95 = tpu.matmul %78, %94, %cst_44 {dimension_numbers = #tpu.dot_dimension_numbers<[1], [0], [0], [1], [0, 0, 1, 1], [], []>} : vector<32x128xf32>, vector<128x128xf32>, vector<32x128xf32> -> vector<32x128xf32>
    %96 = arith.addf %92, %95 : vector<32x128xf32>
    %c2_45 = arith.constant 2 : index
    %c0_46 = arith.constant 0 : index
    %c0_47 = arith.constant 0 : index
    %97 = vector.load %arg2[%c2_45, %c0_46, %c0_47] : memref<3x128x128xf32, #tpu.memory_space<vmem>>, vector<1x128x128xf32>
    %98 = vector.shape_cast %97 : vector<1x128x128xf32> to vector<128x128xf32>
    %cst_48 = arith.constant dense<0.000000e+00> : vector<32x128xf32>
    %99 = tpu.matmul %89, %98, %cst_48 {dimension_numbers = #tpu.dot_dimension_numbers<[1], [0], [0], [1], [0, 0, 1, 1], [], []>} : vector<32x128xf32>, vector<128x128xf32>, vector<32x128xf32> -> vector<32x128xf32>
    %100 = arith.addf %96, %99 : vector<32x128xf32>
    %c0_49 = arith.constant 0 : index
    %c0_50 = arith.constant 0 : index
    %101 = vector.load %arg5[%c0_49, %c0_50] : memref<128x8xf32, #tpu.memory_space<vmem>>, vector<128x8xf32>
    %c0_51 = arith.constant 0 : index
    %c0_52 = arith.constant 0 : index
    %102 = vector.load %arg6[%c0_51, %c0_52] : memref<8x128xf32, #tpu.memory_space<vmem>>, vector<8x128xf32>
    %c0_53 = arith.constant 0 : index
    %c0_54 = arith.constant 0 : index
    %103 = vector.load %arg9[%c0_53, %c0_54] : memref<1x8xf32, #tpu.memory_space<vmem>>, vector<1x8xf32>
    %c0_55 = arith.constant 0 : index
    %c0_56 = arith.constant 0 : index
    %104 = vector.load %arg10[%c0_55, %c0_56] : memref<1x8xf32, #tpu.memory_space<vmem>>, vector<1x8xf32>
    %cst_57 = arith.constant dense<0.000000e+00> : vector<128xf32>
    %105 = vector.multi_reduction <add>, %100, %cst_57 [0] : vector<32x128xf32> to vector<128xf32>
    %106 = vector.shape_cast %105 : vector<128xf32> to vector<1x128xf32>
    %107 = arith.mulf %100, %100 : vector<32x128xf32>
    %cst_58 = arith.constant dense<0.000000e+00> : vector<128xf32>
    %108 = vector.multi_reduction <add>, %107, %cst_58 [0] : vector<32x128xf32> to vector<128xf32>
    %109 = vector.shape_cast %108 : vector<128xf32> to vector<1x128xf32>
    %110 = tpu.concatenate %106, %109 in 0 : vector<1x128xf32>, vector<1x128xf32> -> vector<2x128xf32>
    %cst_59 = arith.constant dense<0.000000e+00> : vector<2x8xf32>
    %111 = tpu.matmul %110, %101, %cst_59 {dimension_numbers = #tpu.dot_dimension_numbers<[1], [0], [0], [1], [0, 0, 1, 1], [], []>} : vector<2x128xf32>, vector<128x8xf32>, vector<2x8xf32> -> vector<2x8xf32>
    %112 = vector.extract_strided_slice %111 {offsets = [0, 0], sizes = [1, 8], strides = [1, 1]} : vector<2x8xf32> to vector<1x8xf32>
    %cst_60 = arith.constant 0.001953125 : f32
    %113 = vector.broadcast %cst_60 : f32 to vector<1x8xf32>
    %114 = arith.mulf %112, %113 : vector<1x8xf32>
    %115 = vector.extract_strided_slice %111 {offsets = [1, 0], sizes = [1, 8], strides = [1, 1]} : vector<2x8xf32> to vector<1x8xf32>
    %cst_61 = arith.constant 0.001953125 : f32
    %116 = vector.broadcast %cst_61 : f32 to vector<1x8xf32>
    %117 = arith.mulf %115, %116 : vector<1x8xf32>
    %118 = arith.mulf %114, %114 : vector<1x8xf32>
    %119 = arith.subf %117, %118 : vector<1x8xf32>
    %cst_62 = arith.constant 9.99999974E-6 : f32
    %120 = vector.broadcast %cst_62 : f32 to vector<1x8xf32>
    %121 = arith.addf %119, %120 : vector<1x8xf32>
    %122 = math.rsqrt %121 : vector<1x8xf32>
    %123 = arith.mulf %103, %122 : vector<1x8xf32>
    %124 = arith.mulf %114, %123 : vector<1x8xf32>
    %125 = arith.subf %104, %124 : vector<1x8xf32>
    %126 = tpu.concatenate %123, %125 in 0 : vector<1x8xf32>, vector<1x8xf32> -> vector<2x8xf32>
    %cst_63 = arith.constant dense<0.000000e+00> : vector<2x128xf32>
    %127 = tpu.matmul %126, %102, %cst_63 {dimension_numbers = #tpu.dot_dimension_numbers<[1], [0], [0], [1], [0, 0, 1, 1], [], []>} : vector<2x8xf32>, vector<8x128xf32>, vector<2x128xf32> -> vector<2x128xf32>
    %128 = vector.extract_strided_slice %127 {offsets = [0, 0], sizes = [1, 128], strides = [1, 1]} : vector<2x128xf32> to vector<1x128xf32>
    %129 = vector.broadcast %128 : vector<1x128xf32> to vector<32x128xf32>
    %130 = arith.mulf %100, %129 : vector<32x128xf32>
    %131 = vector.extract_strided_slice %127 {offsets = [1, 0], sizes = [1, 128], strides = [1, 1]} : vector<2x128xf32> to vector<1x128xf32>
    %132 = vector.broadcast %131 : vector<1x128xf32> to vector<32x128xf32>
    %133 = arith.addf %130, %132 : vector<32x128xf32>
    %134 = arith.addf %133, %79 : vector<32x128xf32>
    %cst_64 = arith.constant 0.000000e+00 : f32
    %135 = vector.broadcast %cst_64 : f32 to vector<32x128xf32>
    %136 = arith.maximumf %134, %135 : vector<32x128xf32>
    %c0_65 = arith.constant 0 : index
    %c0_66 = arith.constant 0 : index
    %137 = vector.load %arg11[%c0_65, %c0_66] : memref<32x128xf32, #tpu.memory_space<vmem>>, vector<32x128xf32>
    tpu.vector_store %arg11[%c0_65, %c0_66], %136 {strides = array<i32>} : memref<32x128xf32, #tpu.memory_space<vmem>>, vector<32x128xf32>,
    return
  }
}

</mosaic_0001>

<llo_original>
// kernel: residual_forward.1
$region0: #{residual_forward.1}
  #allocation0 [shape = 'u32[]', space=smem, size = 0x4, offset = 0x4, fixed_abs, tag = 'smem constant byte address 0x4 - core index']
  #allocation1 [shape = 'u32[144,128]{1,0:T(1,128)}', space=vmem, size = 0x12000, scoped, tag = 'internal scratch']
  %s0 = inlined_call_operand.vmem [shape: f32[32,64], index: 0, kind: input, shape index: {}]
  %s1 = inlined_call_operand.vmem [shape: f32[3,64,256], index: 1, kind: input, shape index: {}]
  %s2 = inlined_call_operand.vmem [shape: f32[3,128,128], index: 2, kind: input, shape index: {}]
  %s3 = inlined_call_operand.vmem [shape: f32[256,16], index: 3, kind: input, shape index: {}]
  %s4 = inlined_call_operand.vmem [shape: f32[16,256], index: 4, kind: input, shape index: {}]
  %s5 = inlined_call_operand.vmem [shape: f32[128,8], index: 5, kind: input, shape index: {}]
  %s6 = inlined_call_operand.vmem [shape: f32[8,128], index: 6, kind: input, shape index: {}]
  %s7 = inlined_call_operand.vmem [shape: f32[1,16], index: 7, kind: input, shape index: {}]
  %s8 = inlined_call_operand.vmem [shape: f32[1,16], index: 8, kind: input, shape index: {}]
  %s9 = inlined_call_operand.vmem [shape: f32[1,8], index: 9, kind: input, shape index: {}]
  %s10 = inlined_call_operand.vmem [shape: f32[1,8], index: 10, kind: input, shape index: {}]
  %s11 = inlined_call_operand.vmem [shape: f32[32,128], index: 11, kind: output, shape index: {}]
  %s12 = sld [smem:[#allocation0]]
  $region54: #{residual_forward.1} parent=0
    _
  %s14 = ssub.s32 1, %s12
  %s15 = scalar_select 0, %s14, %s12
  // Predicated region
  $region2: #{residual_forward.1} parent=0 // pred_check
    _
  $region3: #{residual_forward.1} parent=0 // pred_check_branch
    %17 = sbr.rel (0) target = $region5
  $region4: #{residual_forward.1} parent=0 // pred_region
    _
  $region5: #{residual_forward.1} parent=0 // pred_fallthru
    _
  // Predicated region
  $region6: #{residual_forward.1} parent=0 // pred_check
    _
  $region7: #{residual_forward.1} parent=0 // pred_check_branch
    %19 = sbr.rel (0) target = $region9
  $region8: #{residual_forward.1} parent=0 // pred_region
    _
  $region9: #{residual_forward.1} parent=0 // pred_fallthru
    _
  // Predicated region
  $region10: #{residual_forward.1} parent=0 // pred_check
    _
  $region11: #{residual_forward.1} parent=0 // pred_check_branch
    %21 = sbr.rel (0) target = $region13
  $region12: #{residual_forward.1} parent=0 // pred_region
    _
  $region13: #{residual_forward.1} parent=0 // pred_fallthru
    _
  // Predicated region
  $region14: #{residual_forward.1} parent=0 // pred_check
    _
  $region15: #{residual_forward.1} parent=0 // pred_check_branch
    %23 = sbr.rel (0) target = $region17
  $region16: #{residual_forward.1} parent=0 // pred_region
    _
  $region17: #{residual_forward.1} parent=0 // pred_fallthru
    _
  // Predicated region
  $region18: #{residual_forward.1} parent=0 // pred_check
    _
  $region19: #{residual_forward.1} parent=0 // pred_check_branch
    %25 = sbr.rel (0) target = $region21
  $region20: #{residual_forward.1} parent=0 // pred_region
    _
  $region21: #{residual_forward.1} parent=0 // pred_fallthru
    _
  // Predicated region
  $region22: #{residual_forward.1} parent=0 // pred_check
    _
  $region23: #{residual_forward.1} parent=0 // pred_check_branch
    %27 = sbr.rel (0) target = $region25
  $region24: #{residual_forward.1} parent=0 // pred_region
    _
  $region25: #{residual_forward.1} parent=0 // pred_fallthru
    _
  // Predicated region
  $region26: #{residual_forward.1} parent=0 // pred_check
    _
  $region27: #{residual_forward.1} parent=0 // pred_check_branch
    %29 = sbr.rel (0) target = $region29
  $region28: #{residual_forward.1} parent=0 // pred_region
    _
  $region29: #{residual_forward.1} parent=0 // pred_fallthru
    _
  // Predicated region
  $region30: #{residual_forward.1} parent=0 // pred_check
    _
  $region31: #{residual_forward.1} parent=0 // pred_check_branch
    %31 = sbr.rel (0) target = $region33
  $region32: #{residual_forward.1} parent=0 // pred_region
    _
  $region33: #{residual_forward.1} parent=0 // pred_fallthru
    _
  // Predicated region
  $region34: #{residual_forward.1} parent=0 // pred_check
    _
  $region35: #{residual_forward.1} parent=0 // pred_check_branch
    %33 = sbr.rel (0) target = $region37
  $region36: #{residual_forward.1} parent=0 // pred_region
    _
  $region37: #{residual_forward.1} parent=0 // pred_fallthru
    _
  // Predicated region
  $region38: #{residual_forward.1} parent=0 // pred_check
    _
  $region39: #{residual_forward.1} parent=0 // pred_check_branch
    %35 = sbr.rel (0) target = $region41
  $region40: #{residual_forward.1} parent=0 // pred_region
    _
  $region41: #{residual_forward.1} parent=0 // pred_fallthru
    _
  // Predicated region
  $region42: #{residual_forward.1} parent=0 // pred_check
    _
  $region43: #{residual_forward.1} parent=0 // pred_check_branch
    %37 = sbr.rel (0) target = $region45
  $region44: #{residual_forward.1} parent=0 // pred_region
    _
  $region45: #{residual_forward.1} parent=0 // pred_fallthru
    _
  %v38 = vlaneseq
  %v39 = vshrl.u32 %v38, 7
  %v40 = vadd.s32 %v39, 8
  %v41 = vadd.s32 %v39, 16
  %v42 = vadd.s32 %v39, 24
  %vm43 = vcmp.lt.s32.totalorder %v39, 0
  %v44 = vsub.s32 0, %v39
  %v45 = vsel %vm43, %v44, %v39
  %v46 = vshrl.u32 %v45, 4
  %v47 = vand.u32 %v45, 15
  %v48 = vsub.s32 0, %v47
  %v49 = vsel %vm43, %v48, %v47
  %vm50 = vcmp.lt.s32.totalorder %v40, 0
  %v51 = vsub.s32 0, %v40
  %v52 = vsel %vm50, %v51, %v40
  %v53 = vshrl.u32 %v52, 4
  %v54 = vand.u32 %v52, 15
  %v55 = vsub.s32 0, %v54
  %v56 = vsel %vm50, %v55, %v54
  %vm57 = vcmp.lt.s32.totalorder %v41, 0
  %v58 = vsub.s32 0, %v41
  %v59 = vsel %vm57, %v58, %v41
  %v60 = vshrl.u32 %v59, 4
  %v61 = vand.u32 %v59, 15
  %v62 = vsub.s32 0, %v61
  %v63 = vsel %vm57, %v62, %v61
  %vm64 = vcmp.lt.s32.totalorder %v42, 0
  %v65 = vsub.s32 0, %v42
  %v66 = vsel %vm64, %v65, %v42
  %v67 = vshrl.u32 %v66, 4
  %v68 = vand.u32 %v66, 15
  %v69 = vsub.s32 0, %v68
  %v70 = vsel %vm64, %v69, %v68
  %vm71 = vcmp.ne.s32.totalorder %v49, 0
  %vm72 = vcmp.ne.s32.totalorder %v56, 0
  %vm73 = vcmp.ne.s32.totalorder %v63, 0
  %vm74 = vcmp.ne.s32.totalorder %v70, 0
  %vm75 = vcmp.lt.s32.totalorder %v49, 0
  %vm76 = vcmp.lt.s32.totalorder %v56, 0
  %vm77 = vcmp.lt.s32.totalorder %v63, 0
  %vm78 = vcmp.lt.s32.totalorder %v70, 0
  %vm79 = vmand %vm75, %vm71
  %vm80 = vmand %vm76, %vm72
  %vm81 = vmand %vm77, %vm73
  %vm82 = vmand %vm78, %vm74
  %v83 = vadd.s32 %v49, 16
  %v84 = vadd.s32 %v56, 16
  %v85 = vadd.s32 %v63, 16
  %v86 = vadd.s32 %v70, 16
  %v87 = vsel %vm79, %v83, %v49
  %v88 = vsel %vm80, %v84, %v56
  %v89 = vsel %vm81, %v85, %v63
  %v90 = vsel %vm82, %v86, %v70
  %vm91 = vcmp.ne.s32.totalorder %v87, 0
  %vm92 = vcmp.ne.s32.totalorder %v88, 0
  %vm93 = vcmp.ne.s32.totalorder %v89, 0
  %vm94 = vcmp.ne.s32.totalorder %v90, 0
  %vm95 = vcmp.ne.s32.totalorder %v87, 15
  %vm96 = vcmp.ne.s32.totalorder %v88, 15
  %vm97 = vcmp.ne.s32.totalorder %v89, 15
  %vm98 = vcmp.ne.s32.totalorder %v90, 15
  %v99 = vld [vmem:[%s0] sm:$0xff]
  %v100 = vld [vmem:[%s0 + $0x8] sm:$0xff]
  %v101 = vld [vmem:[%s0 + $0x10] sm:$0xff]
  %v102 = vld [vmem:[%s0 + $0x18] sm:$0xff]
  %v103 = vrot.slane %v99, 7
  %v104 = vrot.slane %v100, 7
  %v105 = vrot.slane %v101, 7
  %v106 = vrot.slane %v102, 7
  %vm107 = vcmp.lt.s32.totalorder %v39, 1
  %v108 = vsel %vm107, %v105, %v106
  %v109 = vsel %vm107, %v104, %v105
  %v110 = vsel %vm107, %v103, %v104
  %v111 = vsel %vm107, %v106, %v103
  %v112 = vsel %vm91, 1, 0
  %v113 = vsel %vm92, 1, 0
  %v114 = vsel %vm93, 1, 0
  %v115 = vsel %vm94, 1, 0
  %vm116 = vcmp.eq.s32.totalorder %v112, 1
  %vm117 = vcmp.eq.s32.totalorder %v113, 1
  %vm118 = vcmp.eq.s32.totalorder %v114, 1
  %vm119 = vcmp.eq.s32.totalorder %v115, 1
  %v120 = vsel %vm116, %v111, 0.0
  %v121 = vsel %vm117, %v110, 0.0
  %v122 = vsel %vm118, %v109, 0.0
  %v123 = vsel %vm119, %v108, 0.0
  %v124 = vrot.slane %v99, 1
  %v125 = vrot.slane %v100, 1
  %v126 = vrot.slane %v101, 1
  %v127 = vrot.slane %v102, 1
  %vm128 = vcmp.lt.s32.totalorder %v39, 7
  %v129 = vsel %vm128, %v126, %v127
  %v130 = vsel %vm128, %v125, %v126
  %v131 = vsel %vm128, %v124, %v125
  %v132 = vsel %vm128, %v127, %v124
  %v133 = vsel %vm95, 1, 0
  %v134 = vsel %vm96, 1, 0
  %v135 = vsel %vm97, 1, 0
  %v136 = vsel %vm98, 1, 0
  %vm137 = vcmp.eq.s32.totalorder %v133, 1
  %vm138 = vcmp.eq.s32.totalorder %v134, 1
  %vm139 = vcmp.eq.s32.totalorder %v135, 1
  %vm140 = vcmp.eq.s32.totalorder %v136, 1
  %v141 = vsel %vm137, %v131, 0.0
  %v142 = vsel %vm138, %v130, 0.0
  %v143 = vsel %vm139, %v129, 0.0
  %v144 = vsel %vm140, %v132, 0.0
  %v145 = vld [vmem:[%s1] sm:$0xff]
  %v146 = vld [vmem:[%s1 + $0x8] sm:$0xff]
  %v147 = vld [vmem:[%s1 + $0x10] sm:$0xff]
  %v148 = vld [vmem:[%s1 + $0x18] sm:$0xff]
  %v149 = vld [vmem:[%s1 + $0x20] sm:$0xff]
  %v150 = vld [vmem:[%s1 + $0x28] sm:$0xff]
  %v151 = vld [vmem:[%s1 + $0x30] sm:$0xff]
  %v152 = vld [vmem:[%s1 + $0x38] sm:$0xff]
  %v153 = vld [vmem:[%s1 + $0x40] sm:$0xff]
  %v154 = vld [vmem:[%s1 + $0x48] sm:$0xff]
  %v155 = vld [vmem:[%s1 + $0x50] sm:$0xff]
  %v156 = vld [vmem:[%s1 + $0x58] sm:$0xff]
  %v157 = vld [vmem:[%s1 + $0x60] sm:$0xff]
  %v158 = vld [vmem:[%s1 + $0x68] sm:$0xff]
  %v159 = vld [vmem:[%s1 + $0x70] sm:$0xff]
  %v160 = vld [vmem:[%s1 + $0x78] sm:$0xff]
  %s161 = scalar_lea.vmem %s1, 128
  %v162 = vld [vmem:[%s161] sm:$0xff]
  %v163 = vld [vmem:[%s161 + $0x8] sm:$0xff]
  %v164 = vld [vmem:[%s161 + $0x10] sm:$0xff]
  %v165 = vld [vmem:[%s161 + $0x18] sm:$0xff]
  %v166 = vld [vmem:[%s161 + $0x20] sm:$0xff]
  %v167 = vld [vmem:[%s161 + $0x28] sm:$0xff]
  %v168 = vld [vmem:[%s161 + $0x30] sm:$0xff]
  %v169 = vld [vmem:[%s161 + $0x38] sm:$0xff]
  %v170 = vld [vmem:[%s161 + $0x40] sm:$0xff]
  %v171 = vld [vmem:[%s161 + $0x48] sm:$0xff]
  %v172 = vld [vmem:[%s161 + $0x50] sm:$0xff]
  %v173 = vld [vmem:[%s161 + $0x58] sm:$0xff]
  %v174 = vld [vmem:[%s161 + $0x60] sm:$0xff]
  %v175 = vld [vmem:[%s161 + $0x68] sm:$0xff]
  %v176 = vld [vmem:[%s161 + $0x70] sm:$0xff]
  %v177 = vld [vmem:[%s161 + $0x78] sm:$0xff]
  %vm178 = vcmask 523264
  %v180 = vsel %vm178, %v99, 0
  %v183 = vsel %vm178, %v100, 0
  %v186 = vsel %vm178, %v101, 0
  %v189 = vsel %vm178, %v102, 0
  %191 = vmatprep.subr.mxu0 %v163
  %192 = vmatpush1.msra.mxu0 %v162
  %193 = vmatprep.subr.mxu0 %v165
  %194 = vmatpush1.msra.mxu0 %v164
  %195 = vmatprep.subr.mxu0 %v167
  %196 = vmatpush1.msra.mxu0 %v166
  %197 = vmatprep.subr.mxu0 %v169
  %198 = vmatpush1.msra.mxu0 %v168
  %199 = vmatprep.subr.mxu0 %v171
  %200 = vmatpush1.msra.mxu0 %v170
  %201 = vmatprep.subr.mxu0 %v173
  %202 = vmatpush1.msra.mxu0 %v172
  %203 = vmatprep.subr.mxu0 %v175
  %204 = vmatpush1.msra.mxu0 %v174
  %205 = vmatprep.subr.mxu0 %v177
  %206 = vmatpush1.msra.mxu0 %v176
  %207 = vmatprep.subr.mxu0 0.0
  %208 = vmatpush1.msra.mxu0 0.0
  %209 = vmatprep.subr.mxu0 0.0
  %210 = vmatpush1.msra.mxu0 0.0
  %211 = vmatprep.subr.mxu0 0.0
  %212 = vmatpush1.msra.mxu0 0.0
  %213 = vmatprep.subr.mxu0 0.0
  %214 = vmatpush1.msra.mxu0 0.0
  %215 = vmatprep.subr.mxu0 0.0
  %216 = vmatpush1.msra.mxu0 0.0
  %217 = vmatprep.subr.mxu0 0.0
  %218 = vmatpush1.msra.mxu0 0.0
  %219 = vmatprep.subr.mxu0 0.0
  %220 = vmatpush1.msra.mxu0 0.0
  %221 = vmatprep.subr.mxu0 0.0
  %222 = vmatpush1.msra.mxu0 0.0
  %223 = vmatprep.subr.mxu0 0.0
  %224 = vmatpush1.msra.mxu0 0.0
  %225 = vmatprep.subr.mxu0 0.0
  %226 = vmatpush1.msra.mxu0 0.0
  %227 = vmatprep.subr.mxu0 0.0
  %228 = vmatpush1.msra.mxu0 0.0
  %229 = vmatprep.subr.mxu0 0.0
  %230 = vmatpush1.msra.mxu0 0.0
  %231 = vmatprep.subr.mxu0 0.0
  %232 = vmatpush1.msra.mxu0 0.0
  %233 = vmatprep.subr.mxu0 0.0
  %234 = vmatpush1.msra.mxu0 0.0
  %235 = vmatprep.subr.mxu0 0.0
  %236 = vmatpush1.msra.mxu0 0.0
  %237 = vmatprep.subr.mxu0 0.0
  %238 = vmatpush1.msra.mxu0 0.0
  %239 = vmatprep.subr.mxu0 0.0
  %240 = vmatpush1.msra.mxu0 0.0
  %241 = vmatprep.subr.mxu0 0.0
  %242 = vmatpush1.msra.mxu0 0.0
  %243 = vmatprep.subr.mxu0 0.0
  %244 = vmatpush1.msra.mxu0 0.0
  %245 = vmatprep.subr.mxu0 0.0
  %246 = vmatpush1.msra.mxu0 0.0
  %247 = vmatprep.subr.mxu0 0.0
  %248 = vmatpush1.msra.mxu0 0.0
  %249 = vmatprep.subr.mxu0 0.0
  %250 = vmatpush1.msra.mxu0 0.0
  %251 = vmatprep.subr.mxu0 0.0
  %252 = vmatpush1.msra.mxu0 0.0
  %253 = vmatprep.subr.mxu0 0.0
  %254 = vmatpush1.msra.mxu0 0.0
  %255 = vmatprep.mubr.f32.mxu0 0.0
  %256 = vmatmul.mubr.f32.gmra.mrb[0].mxu0 %v180
  %v257 = vpop.f32.mrb[0].mxu0
  %v258 = vadd.f32 0.0, %v257
  %v259 = vpop.f32.mrb[0].mxu0
  %v260 = vadd.f32 0.0, %v259
  %261 = vmatprep.mubr.f32.mxu0 0.0
  %262 = vmatmul.mubr.f32.gmra.mrb[0].mxu0 %v183
  %v263 = vpop.f32.mrb[0].mxu0
  %v264 = vadd.f32 0.0, %v263
  %v265 = vpop.f32.mrb[0].mxu0
  %v266 = vadd.f32 0.0, %v265
  %267 = vmatprep.mubr.f32.mxu0 0.0
  %268 = vmatmul.mubr.f32.gmra.mrb[0].mxu0 %v186
  %v269 = vpop.f32.mrb[0].mxu0
  %v270 = vadd.f32 0.0, %v269
  %v271 = vpop.f32.mrb[0].mxu0
  %v272 = vadd.f32 0.0, %v271
  %273 = vmatprep.mubr.f32.mxu0 0.0
  %274 = vmatmul.mubr.f32.gmra.mrb[0].mxu0 %v189
  %v275 = vpop.f32.mrb[0].mxu0
  %v276 = vadd.f32 0.0, %v275
  %v277 = vpop.f32.mrb[0].mxu0
  %v278 = vadd.f32 0.0, %v277
  %279 = vdwg.mxu0
  %v281 = vsel %vm178, %v120, 0
  %v284 = vsel %vm178, %v121, 0
  %v287 = vsel %vm178, %v122, 0
  %v290 = vsel %vm178, %v123, 0
  %292 = vmatprep.subr.mxu0 %v146
  %293 = vmatpush1.msra.mxu0 %v145
  %294 = vmatprep.subr.mxu0 %v148
  %295 = vmatpush1.msra.mxu0 %v147
  %296 = vmatprep.subr.mxu0 %v150
  %297 = vmatpush1.msra.mxu0 %v149
  %298 = vmatprep.subr.mxu0 %v152
  %299 = vmatpush1.msra.mxu0 %v151
  %300 = vmatprep.subr.mxu0 %v154
  %301 = vmatpush1.msra.mxu0 %v153
  %302 = vmatprep.subr.mxu0 %v156
  %303 = vmatpush1.msra.mxu0 %v155
  %304 = vmatprep.subr.mxu0 %v158
  %305 = vmatpush1.msra.mxu0 %v157
  %306 = vmatprep.subr.mxu0 %v160
  %307 = vmatpush1.msra.mxu0 %v159
  %308 = vmatprep.subr.mxu0 0.0
  %309 = vmatpush1.msra.mxu0 0.0
  %310 = vmatprep.subr.mxu0 0.0
  %311 = vmatpush1.msra.mxu0 0.0
  %312 = vmatprep.subr.mxu0 0.0
  %313 = vmatpush1.msra.mxu0 0.0
  %314 = vmatprep.subr.mxu0 0.0
  %315 = vmatpush1.msra.mxu0 0.0
  %316 = vmatprep.subr.mxu0 0.0
  %317 = vmatpush1.msra.mxu0 0.0
  %318 = vmatprep.subr.mxu0 0.0
  %319 = vmatpush1.msra.mxu0 0.0
  %320 = vmatprep.subr.mxu0 0.0
  %321 = vmatpush1.msra.mxu0 0.0
  %322 = vmatprep.subr.mxu0 0.0
  %323 = vmatpush1.msra.mxu0 0.0
  %324 = vmatprep.subr.mxu0 0.0
  %325 = vmatpush1.msra.mxu0 0.0
  %326 = vmatprep.subr.mxu0 0.0
  %327 = vmatpush1.msra.mxu0 0.0
  %328 = vmatprep.subr.mxu0 0.0
  %329 = vmatpush1.msra.mxu0 0.0
  %330 = vmatprep.subr.mxu0 0.0
  %331 = vmatpush1.msra.mxu0 0.0
  %332 = vmatprep.subr.mxu0 0.0
  %333 = vmatpush1.msra.mxu0 0.0
  %334 = vmatprep.subr.mxu0 0.0
  %335 = vmatpush1.msra.mxu0 0.0
  %336 = vmatprep.subr.mxu0 0.0
  %337 = vmatpush1.msra.mxu0 0.0
  %338 = vmatprep.subr.mxu0 0.0
  %339 = vmatpush1.msra.mxu0 0.0
  %340 = vmatprep.subr.mxu0 0.0
  %341 = vmatpush1.msra.mxu0 0.0
  %342 = vmatprep.subr.mxu0 0.0
  %343 = vmatpush1.msra.mxu0 0.0
  %344 = vmatprep.subr.mxu0 0.0
  %345 = vmatpush1.msra.mxu0 0.0
  %346 = vmatprep.subr.mxu0 0.0
  %347 = vmatpush1.msra.mxu0 0.0
  %348 = vmatprep.subr.mxu0 0.0
  %349 = vmatpush1.msra.mxu0 0.0
  %350 = vmatprep.subr.mxu0 0.0
  %351 = vmatpush1.msra.mxu0 0.0
  %352 = vmatprep.subr.mxu0 0.0
  %353 = vmatpush1.msra.mxu0 0.0
  %354 = vmatprep.subr.mxu0 0.0
  %355 = vmatpush1.msra.mxu0 0.0
  %356 = vmatprep.mubr.f32.mxu0 0.0
  %357 = vmatmul.mubr.f32.gmra.mrb[0].mxu0 %v281
  %v358 = vpop.f32.mrb[0].mxu0
  %v359 = vadd.f32 %v258, %v358
  %v360 = vpop.f32.mrb[0].mxu0
  %v361 = vadd.f32 %v260, %v360
  %362 = vmatprep.mubr.f32.mxu0 0.0
  %363 = vmatmul.mubr.f32.gmra.mrb[0].mxu0 %v284
  %v364 = vpop.f32.mrb[0].mxu0
  %v365 = vadd.f32 %v264, %v364
  %v366 = vpop.f32.mrb[0].mxu0
  %v367 = vadd.f32 %v266, %v366
  %368 = vmatprep.mubr.f32.mxu0 0.0
  %369 = vmatmul.mubr.f32.gmra.mrb[0].mxu0 %v287
  %v370 = vpop.f32.mrb[0].mxu0
  %v371 = vadd.f32 %v270, %v370
  %v372 = vpop.f32.mrb[0].mxu0
  %v373 = vadd.f32 %v272, %v372
  %374 = vmatprep.mubr.f32.mxu0 0.0
  %375 = vmatmul.mubr.f32.gmra.mrb[0].mxu0 %v290
  %v376 = vpop.f32.mrb[0].mxu0
  %v377 = vadd.f32 %v276, %v376
  %v378 = vpop.f32.mrb[0].mxu0
  %v379 = vadd.f32 %v278, %v378
  %380 = vdwg.mxu0
  %s381 = scalar_lea.vmem %s1, 256
  %v382 = vld [vmem:[%s381] sm:$0xff]
  %v383 = vld [vmem:[%s381 + $0x8] sm:$0xff]
  %v384 = vld [vmem:[%s381 + $0x10] sm:$0xff]
  %v385 = vld [vmem:[%s381 + $0x18] sm:$0xff]
  %v386 = vld [vmem:[%s381 + $0x20] sm:$0xff]
  %v387 = vld [vmem:[%s381 + $0x28] sm:$0xff]
  %v388 = vld [vmem:[%s381 + $0x30] sm:$0xff]
  %v389 = vld [vmem:[%s381 + $0x38] sm:$0xff]
  %v390 = vld [vmem:[%s381 + $0x40] sm:$0xff]
  %v391 = vld [vmem:[%s381 + $0x48] sm:$0xff]
  %v392 = vld [vmem:[%s381 + $0x50] sm:$0xff]
  %v393 = vld [vmem:[%s381 + $0x58] sm:$0xff]
  %v394 = vld [vmem:[%s381 + $0x60] sm:$0xff]
  %v395 = vld [vmem:[%s381 + $0x68] sm:$0xff]
  %v396 = vld [vmem:[%s381 + $0x70] sm:$0xff]
  %v397 = vld [vmem:[%s381 + $0x78] sm:$0xff]
  %v399 = vsel %vm178, %v141, 0
  %v402 = vsel %vm178, %v142, 0
  %v405 = vsel %vm178, %v143, 0
  %v408 = vsel %vm178, %v144, 0
  %410 = vmatprep.subr.mxu0 %v383
  %411 = vmatpush1.msra.mxu0 %v382
  %412 = vmatprep.subr.mxu0 %v385
  %413 = vmatpush1.msra.mxu0 %v384
  %414 = vmatprep.subr.mxu0 %v387
  %415 = vmatpush1.msra.mxu0 %v386
  %416 = vmatprep.subr.mxu0 %v389
  %417 = vmatpush1.msra.mxu0 %v388
  %418 = vmatprep.subr.mxu0 %v391
  %419 = vmatpush1.msra.mxu0 %v390
  %420 = vmatprep.subr.mxu0 %v393
  %421 = vmatpush1.msra.mxu0 %v392
  %422 = vmatprep.subr.mxu0 %v395
  %423 = vmatpush1.msra.mxu0 %v394
  %424 = vmatprep.subr.mxu0 %v397
  %425 = vmatpush1.msra.mxu0 %v396
  %426 = vmatprep.subr.mxu0 0.0
  %427 = vmatpush1.msra.mxu0 0.0
  %428 = vmatprep.subr.mxu0 0.0
  %429 = vmatpush1.msra.mxu0 0.0
  %430 = vmatprep.subr.mxu0 0.0
  %431 = vmatpush1.msra.mxu0 0.0
  %432 = vmatprep.subr.mxu0 0.0
  %433 = vmatpush1.msra.mxu0 0.0
  %434 = vmatprep.subr.mxu0 0.0
  %435 = vmatpush1.msra.mxu0 0.0
  %436 = vmatprep.subr.mxu0 0.0
  %437 = vmatpush1.msra.mxu0 0.0
  %438 = vmatprep.subr.mxu0 0.0
  %439 = vmatpush1.msra.mxu0 0.0
  %440 = vmatprep.subr.mxu0 0.0
  %441 = vmatpush1.msra.mxu0 0.0
  %442 = vmatprep.subr.mxu0 0.0
  %443 = vmatpush1.msra.mxu0 0.0
  %444 = vmatprep.subr.mxu0 0.0
  %445 = vmatpush1.msra.mxu0 0.0
  %446 = vmatprep.subr.mxu0 0.0
  %447 = vmatpush1.msra.mxu0 0.0
  %448 = vmatprep.subr.mxu0 0.0
  %449 = vmatpush1.msra.mxu0 0.0
  %450 = vmatprep.subr.mxu0 0.0
  %451 = vmatpush1.msra.mxu0 0.0
  %452 = vmatprep.subr.mxu0 0.0
  %453 = vmatpush1.msra.mxu0 0.0
  %454 = vmatprep.subr.mxu0 0.0
  %455 = vmatpush1.msra.mxu0 0.0
  %456 = vmatprep.subr.mxu0 0.0
  %457 = vmatpush1.msra.mxu0 0.0
  %458 = vmatprep.subr.mxu0 0.0
  %459 = vmatpush1.msra.mxu0 0.0
  %460 = vmatprep.subr.mxu0 0.0
  %461 = vmatpush1.msra.mxu0 0.0
  %462 = vmatprep.subr.mxu0 0.0
  %463 = vmatpush1.msra.mxu0 0.0
  %464 = vmatprep.subr.mxu0 0.0
  %465 = vmatpush1.msra.mxu0 0.0
  %466 = vmatprep.subr.mxu0 0.0
  %467 = vmatpush1.msra.mxu0 0.0
  %468 = vmatprep.subr.mxu0 0.0
  %469 = vmatpush1.msra.mxu0 0.0
  %470 = vmatprep.subr.mxu0 0.0
  %471 = vmatpush1.msra.mxu0 0.0
  %472 = vmatprep.subr.mxu0 0.0
  %473 = vmatpush1.msra.mxu0 0.0
  %474 = vmatprep.mubr.f32.mxu0 0.0
  %475 = vmatmul.mubr.f32.gmra.mrb[0].mxu0 %v399
  %v476 = vpop.f32.mrb[0].mxu0
  %v477 = vadd.f32 0.0, %v476
  %v478 = vpop.f32.mrb[0].mxu0
  %v479 = vadd.f32 0.0, %v478
  %480 = vmatprep.mubr.f32.mxu0 0.0
  %481 = vmatmul.mubr.f32.gmra.mrb[0].mxu0 %v402
  %v482 = vpop.f32.mrb[0].mxu0
  %v483 = vadd.f32 0.0, %v482
  %v484 = vpop.f32.mrb[0].mxu0
  %v485 = vadd.f32 0.0, %v484
  %486 = vmatprep.mubr.f32.mxu0 0.0
  %487 = vmatmul.mubr.f32.gmra.mrb[0].mxu0 %v405
  %v488 = vpop.f32.mrb[0].mxu0
  %v489 = vadd.f32 0.0, %v488
  %v490 = vpop.f32.mrb[0].mxu0
  %v491 = vadd.f32 0.0, %v490
  %492 = vmatprep.mubr.f32.mxu0 0.0
  %493 = vmatmul.mubr.f32.gmra.mrb[0].mxu0 %v408
  %v494 = vpop.f32.mrb[0].mxu0
  %v495 = vadd.f32 0.0, %v494
  %v496 = vpop.f32.mrb[0].mxu0
  %v497 = vadd.f32 0.0, %v496
  %498 = vdwg.mxu0
  %v499 = vadd.f32 %v359, %v477
  %v500 = vadd.f32 %v361, %v479
  %v501 = vadd.f32 %v365, %v483
  %v502 = vadd.f32 %v367, %v485
  %v503 = vadd.f32 %v371, %v489
  %v504 = vadd.f32 %v373, %v491
  %v505 = vadd.f32 %v377, %v495
  %v506 = vadd.f32 %v379, %v497
  %v507 = vld [vmem:[%s3] sm:$0xff]
  %v508 = vld [vmem:[%s3 + $0x8] sm:$0xff]
  %v509 = vld [vmem:[%s3 + $0x10] sm:$0xff]
  %v510 = vld [vmem:[%s3 + $0x18] sm:$0xff]
  %v511 = vld [vmem:[%s3 + $0x20] sm:$0xff]
  %v512 = vld [vmem:[%s3 + $0x28] sm:$0xff]
  %v513 = vld [vmem:[%s3 + $0x30] sm:$0xff]
  %v514 = vld [vmem:[%s3 + $0x38] sm:$0xff]
  %v515 = vld [vmem:[%s3 + $0x40] sm:$0xff]
  %v516 = vld [vmem:[%s3 + $0x48] sm:$0xff]
  %v517 = vld [vmem:[%s3 + $0x50] sm:$0xff]
  %v518 = vld [vmem:[%s3 + $0x58] sm:$0xff]
  %v519 = vld [vmem:[%s3 + $0x60] sm:$0xff]
  %v520 = vld [vmem:[%s3 + $0x68] sm:$0xff]
  %v521 = vld [vmem:[%s3 + $0x70] sm:$0xff]
  %v522 = vld [vmem:[%s3 + $0x78] sm:$0xff]
  %v523 = vld [vmem:[%s3 + $0x80] sm:$0xff]
  %v524 = vld [vmem:[%s3 + $0x88] sm:$0xff]
  %v525 = vld [vmem:[%s3 + $0x90] sm:$0xff]
  %v526 = vld [vmem:[%s3 + $0x98] sm:$0xff]
  %v527 = vld [vmem:[%s3 + $0xa0] sm:$0xff]
  %v528 = vld [vmem:[%s3 + $0xa8] sm:$0xff]
  %v529 = vld [vmem:[%s3 + $0xb0] sm:$0xff]
  %v530 = vld [vmem:[%s3 + $0xb8] sm:$0xff]
  %v531 = vld [vmem:[%s3 + $0xc0] sm:$0xff]
  %v532 = vld [vmem:[%s3 + $0xc8] sm:$0xff]
  %v533 = vld [vmem:[%s3 + $0xd0] sm:$0xff]
  %v534 = vld [vmem:[%s3 + $0xd8] sm:$0xff]
  %v535 = vld [vmem:[%s3 + $0xe0] sm:$0xff]
  %v536 = vld [vmem:[%s3 + $0xe8] sm:$0xff]
  %v537 = vld [vmem:[%s3 + $0xf0] sm:$0xff]
  %v538 = vld [vmem:[%s3 + $0xf8] sm:$0xff]
  %v539 = vld [vmem:[%s4] sm:$0xff]
  %v540 = vld [vmem:[%s4 + $0x8] sm:$0xff]
  %v541 = vld [vmem:[%s4 + $0x10] sm:$0xff]
  %v542 = vld [vmem:[%s4 + $0x18] sm:$0xff]
  %v543 = vld [vmem:[%s7] sm:$0x1]
  %v544 = vld [vmem:[%s8] sm:$0x1]
  %v545 = vadd.f32 %v499, %v501
  %v546 = vadd.f32 %v545, %v503
  %v547 = vadd.f32 %v546, %v505
  %v548 = vrot.slane %v547, 4
  %v549 = vadd.f32 %v547, %v548
  %v550 = vrot.slane %v549, 2
  %v551 = vadd.f32 %v549, %v550
  %v552 = vrot.slane %v551, 1
  %v553 = vadd.f32 %v551, %v552
  %v554 = vadd.f32 %v500, %v502
  %v555 = vadd.f32 %v554, %v504
  %v556 = vadd.f32 %v555, %v506
  %v557 = vrot.slane %v556, 4
  %v558 = vadd.f32 %v556, %v557
  %v559 = vrot.slane %v558, 2
  %v560 = vadd.f32 %v558, %v559
  %v561 = vrot.slane %v560, 1
  %v562 = vadd.f32 %v560, %v561
  %v563 = vmul.f32 %v499, %v499
  %v564 = vmul.f32 %v500, %v500
  %v565 = vmul.f32 %v501, %v501
  %v566 = vmul.f32 %v502, %v502
  %v567 = vmul.f32 %v503, %v503
  %v568 = vmul.f32 %v504, %v504
  %v569 = vmul.f32 %v505, %v505
  %v570 = vmul.f32 %v506, %v506
  %v571 = vadd.f32 %v563, %v565
  %v572 = vadd.f32 %v571, %v567
  %v573 = vadd.f32 %v572, %v569
  %v574 = vrot.slane %v573, 4
  %v575 = vadd.f32 %v573, %v574
  %v576 = vrot.slane %v575, 2
  %v577 = vadd.f32 %v575, %v576
  %v578 = vrot.slane %v577, 1
  %v579 = vadd.f32 %v577, %v578
  %v580 = vadd.f32 %v564, %v566
  %v581 = vadd.f32 %v580, %v568
  %v582 = vadd.f32 %v581, %v570
  %v583 = vrot.slane %v582, 4
  %v584 = vadd.f32 %v582, %v583
  %v585 = vrot.slane %v584, 2
  %v586 = vadd.f32 %v584, %v585
  %v587 = vrot.slane %v586, 1
  %v588 = vadd.f32 %v586, %v587
  %vm589 = vcmask 1040384
  %v590 = vsel %vm589, %v553, %v579
  %v591 = vsel %vm589, %v562, %v588
  %592 = vmatprep.subr.mxu0 0.0
  %593 = vmatpush1.msra.mxu0 %v507
  %594 = vmatprep.subr.mxu0 0.0
  %595 = vmatpush1.msra.mxu0 %v508
  %596 = vmatprep.subr.mxu0 0.0
  %597 = vmatpush1.msra.mxu0 %v509
  %598 = vmatprep.subr.mxu0 0.0
  %599 = vmatpush1.msra.mxu0 %v510
  %600 = vmatprep.subr.mxu0 0.0
  %601 = vmatpush1.msra.mxu0 %v511
  %602 = vmatprep.subr.mxu0 0.0
  %603 = vmatpush1.msra.mxu0 %v512
  %604 = vmatprep.subr.mxu0 0.0
  %605 = vmatpush1.msra.mxu0 %v513
  %606 = vmatprep.subr.mxu0 0.0
  %607 = vmatpush1.msra.mxu0 %v514
  %608 = vmatprep.subr.mxu0 0.0
  %609 = vmatpush1.msra.mxu0 %v515
  %610 = vmatprep.subr.mxu0 0.0
  %611 = vmatpush1.msra.mxu0 %v516
  %612 = vmatprep.subr.mxu0 0.0
  %613 = vmatpush1.msra.mxu0 %v517
  %614 = vmatprep.subr.mxu0 0.0
  %615 = vmatpush1.msra.mxu0 %v518
  %616 = vmatprep.subr.mxu0 0.0
  %617 = vmatpush1.msra.mxu0 %v519
  %618 = vmatprep.subr.mxu0 0.0
  %619 = vmatpush1.msra.mxu0 %v520
  %620 = vmatprep.subr.mxu0 0.0
  %621 = vmatpush1.msra.mxu0 %v521
  %622 = vmatprep.subr.mxu0 0.0
  %623 = vmatpush1.msra.mxu0 %v522
  %624 = vmatprep.subr.mxu0 0.0
  %625 = vmatpush1.msra.mxu0 %v523
  %626 = vmatprep.subr.mxu0 0.0
  %627 = vmatpush1.msra.mxu0 %v524
  %628 = vmatprep.subr.mxu0 0.0
  %629 = vmatpush1.msra.mxu0 %v525
  %630 = vmatprep.subr.mxu0 0.0
  %631 = vmatpush1.msra.mxu0 %v526
  %632 = vmatprep.subr.mxu0 0.0
  %633 = vmatpush1.msra.mxu0 %v527
  %634 = vmatprep.subr.mxu0 0.0
  %635 = vmatpush1.msra.mxu0 %v528
  %636 = vmatprep.subr.mxu0 0.0
  %637 = vmatpush1.msra.mxu0 %v529
  %638 = vmatprep.subr.mxu0 0.0
  %639 = vmatpush1.msra.mxu0 %v530
  %640 = vmatprep.subr.mxu0 0.0
  %641 = vmatpush1.msra.mxu0 %v531
  %642 = vmatprep.subr.mxu0 0.0
  %643 = vmatpush1.msra.mxu0 %v532
  %644 = vmatprep.subr.mxu0 0.0
  %645 = vmatpush1.msra.mxu0 %v533
  %646 = vmatprep.subr.mxu0 0.0
  %647 = vmatpush1.msra.mxu0 %v534
  %648 = vmatprep.subr.mxu0 0.0
  %649 = vmatpush1.msra.mxu0 %v535
  %650 = vmatprep.subr.mxu0 0.0
  %651 = vmatpush1.msra.mxu0 %v536
  %652 = vmatprep.subr.mxu0 0.0
  %653 = vmatpush1.msra.mxu0 %v537
  %654 = vmatprep.subr.mxu0 0.0
  %655 = vmatpush1.msra.mxu0 %v538
  %656 = vmatprep.mubr.f32.mxu0 %v591
  %657 = vmatmul.mubr.f32.gmra.mrb[0].mxu0 %v590
  %v658 = vpop.f32.mrb[0].mxu0
  %v659 = vadd.f32 0.0, %v658
  %v660 = vpop.f32.mrb[0].mxu0
  %661 = vdwg.mxu0
  %v662 = vmul.f32 %v659, 0.001953125
  %v663 = vmul.f32 %v662, %v662
  %v665 = vrot.slane %v663, 7
  %v667 = vsub.f32 %v662, %v665
  %v668 = vadd.f32 %v667, 1e-05
  %v669 = vrsqrt.pop %v668
  %v672 = vunpack.c.l.s4 1966171168
  %v673 = vunpack.c.0.s8 %v672
  %v674 = vlaneseq
  %v675 = vshrl.u32 %v674, 7
  %v676 = vsub.s32 %v673, %v675
  %v677 = vrot.slane %v669, %v676
  %v678 = vcombine.high %v677, %v677
  %v680 = vunpack.c.l.s4 1966171168
  %v681 = vunpack.c.0.s8 %v680
  %v682 = vlaneseq
  %v683 = vshrl.u32 %v682, 7
  %v684 = vsub.s32 %v681, %v683
  %v685 = vrot.slane %v678, %v684
  %v687 = vmul.f32 %v543, %v685
  %v688 = vmul.f32 %v662, %v687
  %v689 = vsub.f32 %v544, %v688
  %v691 = vlaneseq
  %v692 = vshrl.u32 %v691, 7
  %v693 = vsub.s32 0, %v692
  %v694 = vrot.slane %v689, %v693
  %v696 = vsel %vm589, %v687, %v694
  %vm697 = vcmask 130048
  %v699 = vsel %vm697, %v696, 0
  %701 = vmatprep.subr.mxu0 %v540
  %702 = vmatpush1.msra.mxu0 %v539
  %703 = vmatprep.subr.mxu0 %v542
  %704 = vmatpush1.msra.mxu0 %v541
  %705 = vmatprep.subr.mxu0 0.0
  %706 = vmatpush1.msra.mxu0 0.0
  %707 = vmatprep.subr.mxu0 0.0
  %708 = vmatpush1.msra.mxu0 0.0
  %709 = vmatprep.subr.mxu0 0.0
  %710 = vmatpush1.msra.mxu0 0.0
  %711 = vmatprep.subr.mxu0 0.0
  %712 = vmatpush1.msra.mxu0 0.0
  %713 = vmatprep.subr.mxu0 0.0
  %714 = vmatpush1.msra.mxu0 0.0
  %715 = vmatprep.subr.mxu0 0.0
  %716 = vmatpush1.msra.mxu0 0.0
  %717 = vmatprep.subr.mxu0 0.0
  %718 = vmatpush1.msra.mxu0 0.0
  %719 = vmatprep.subr.mxu0 0.0
  %720 = vmatpush1.msra.mxu0 0.0
  %721 = vmatprep.subr.mxu0 0.0
  %722 = vmatpush1.msra.mxu0 0.0
  %723 = vmatprep.subr.mxu0 0.0
  %724 = vmatpush1.msra.mxu0 0.0
  %725 = vmatprep.subr.mxu0 0.0
  %726 = vmatpush1.msra.mxu0 0.0
  %727 = vmatprep.subr.mxu0 0.0
  %728 = vmatpush1.msra.mxu0 0.0
  %729 = vmatprep.subr.mxu0 0.0
  %730 = vmatpush1.msra.mxu0 0.0
  %731 = vmatprep.subr.mxu0 0.0
  %732 = vmatpush1.msra.mxu0 0.0
  %733 = vmatprep.subr.mxu0 0.0
  %734 = vmatpush1.msra.mxu0 0.0
  %735 = vmatprep.subr.mxu0 0.0
  %736 = vmatpush1.msra.mxu0 0.0
  %737 = vmatprep.subr.mxu0 0.0
  %738 = vmatpush1.msra.mxu0 0.0
  %739 = vmatprep.subr.mxu0 0.0
  %740 = vmatpush1.msra.mxu0 0.0
  %741 = vmatprep.subr.mxu0 0.0
  %742 = vmatpush1.msra.mxu0 0.0
  %743 = vmatprep.subr.mxu0 0.0
  %744 = vmatpush1.msra.mxu0 0.0
  %745 = vmatprep.subr.mxu0 0.0
  %746 = vmatpush1.msra.mxu0 0.0
  %747 = vmatprep.subr.mxu0 0.0
  %748 = vmatpush1.msra.mxu0 0.0
  %749 = vmatprep.subr.mxu0 0.0
  %750 = vmatpush1.msra.mxu0 0.0
  %751 = vmatprep.subr.mxu0 0.0
  %752 = vmatpush1.msra.mxu0 0.0
  %753 = vmatprep.subr.mxu0 0.0
  %754 = vmatpush1.msra.mxu0 0.0
  %755 = vmatprep.subr.mxu0 0.0
  %756 = vmatpush1.msra.mxu0 0.0
  %757 = vmatprep.subr.mxu0 0.0
  %758 = vmatpush1.msra.mxu0 0.0
  %759 = vmatprep.subr.mxu0 0.0
  %760 = vmatpush1.msra.mxu0 0.0
  %761 = vmatprep.subr.mxu0 0.0
  %762 = vmatpush1.msra.mxu0 0.0
  %763 = vmatprep.subr.mxu0 0.0
  %764 = vmatpush1.msra.mxu0 0.0
  %765 = vmatprep.mubr.f32.mxu0 0.0
  %766 = vmatmul.mubr.f32.gmra.mrb[0].mxu0 %v699
  %v767 = vpop.f32.mrb[0].mxu0
  %v768 = vadd.f32 0.0, %v767
  %v769 = vpop.f32.mrb[0].mxu0
  %v770 = vadd.f32 0.0, %v769
  %771 = vdwg.mxu0
  %v772 = vlaneseq
  %v773 = vshrl.u32 %v772, 7
  %v774 = vsub.s32 0, %v773
  %v775 = vrot.slane %v768, %v774
  %v776 = vlaneseq
  %v777 = vshrl.u32 %v776, 7
  %v778 = vsub.s32 0, %v777
  %v779 = vrot.slane %v770, %v778
  %v780 = vmul.f32 %v499, %v775
  %v781 = vmul.f32 %v500, %v779
  %v782 = vmul.f32 %v501, %v775
  %v783 = vmul.f32 %v502, %v779
  %v784 = vmul.f32 %v503, %v775
  %v785 = vmul.f32 %v504, %v779
  %v786 = vmul.f32 %v505, %v775
  %v787 = vmul.f32 %v506, %v779
  %v788 = vlaneseq
  %v789 = vshrl.u32 %v788, 7
  %v790 = vsub.s32 1, %v789
  %v791 = vrot.slane %v768, %v790
  %v792 = vlaneseq
  %v793 = vshrl.u32 %v792, 7
  %v794 = vsub.s32 1, %v793
  %v795 = vrot.slane %v770, %v794
  %v796 = vadd.f32 %v780, %v791
  %v797 = vadd.f32 %v781, %v795
  %v798 = vadd.f32 %v782, %v791
  %v799 = vadd.f32 %v783, %v795
  %v800 = vadd.f32 %v784, %v791
  %v801 = vadd.f32 %v785, %v795
  %v802 = vadd.f32 %v786, %v791
  %v803 = vadd.f32 %v787, %v795
  %v804 = vmax.f32 %v796, 0.0
  %v805 = vmax.f32 %v798, 0.0
  %v806 = vmax.f32 %v800, 0.0
  %v807 = vmax.f32 %v802, 0.0
  %v808 = vrot.slane %v804, 7
  %v809 = vrot.slane %v805, 7
  %v810 = vrot.slane %v806, 7
  %v811 = vrot.slane %v807, 7
  %v812 = vsel %vm107, %v810, %v811
  %v813 = vsel %vm107, %v809, %v810
  %v814 = vsel %vm107, %v808, %v809
  %v815 = vsel %vm107, %v811, %v808
  %v816 = vsel %vm116, %v815, 0.0
  %v817 = vsel %vm117, %v814, 0.0
  %v818 = vsel %vm118, %v813, 0.0
  %v819 = vsel %vm119, %v812, 0.0
  %v820 = vrot.slane %v804, 1
  %v821 = vrot.slane %v805, 1
  %v822 = vrot.slane %v806, 1
  %v823 = vrot.slane %v807, 1
  %v824 = vsel %vm128, %v822, %v823
  %v825 = vsel %vm128, %v821, %v822
  %v826 = vsel %vm128, %v820, %v821
  %v827 = vsel %vm128, %v823, %v820
  %v828 = vsel %vm137, %v826, 0.0
  %v829 = vsel %vm138, %v825, 0.0
  %v830 = vsel %vm139, %v824, 0.0
  %v831 = vsel %vm140, %v827, 0.0
  %v832 = vld [vmem:[%s2] sm:$0xff]
  %v833 = vld [vmem:[%s2 + $0x8] sm:$0xff]
  %v834 = vld [vmem:[%s2 + $0x10] sm:$0xff]
  %v835 = vld [vmem:[%s2 + $0x18] sm:$0xff]
  %v836 = vld [vmem:[%s2 + $0x20] sm:$0xff]
  %v837 = vld [vmem:[%s2 + $0x28] sm:$0xff]
  %v838 = vld [vmem:[%s2 + $0x30] sm:$0xff]
  %v839 = vld [vmem:[%s2 + $0x38] sm:$0xff]
  %v840 = vld [vmem:[%s2 + $0x40] sm:$0xff]
  %v841 = vld [vmem:[%s2 + $0x48] sm:$0xff]
  %v842 = vld [vmem:[%s2 + $0x50] sm:$0xff]
  %v843 = vld [vmem:[%s2 + $0x58] sm:$0xff]
  %v844 = vld [vmem:[%s2 + $0x60] sm:$0xff]
  %v845 = vld [vmem:[%s2 + $0x68] sm:$0xff]
  %v846 = vld [vmem:[%s2 + $0x70] sm:$0xff]
  %v847 = vld [vmem:[%s2 + $0x78] sm:$0xff]
  %s848 = scalar_lea.vmem %s2, 128
  %v849 = vld [vmem:[%s848] sm:$0xff]
  %v850 = vld [vmem:[%s848 + $0x8] sm:$0xff]
  %v851 = vld [vmem:[%s848 + $0x10] sm:$0xff]
  %v852 = vld [vmem:[%s848 + $0x18] sm:$0xff]
  %v853 = vld [vmem:[%s848 + $0x20] sm:$0xff]
  %v854 = vld [vmem:[%s848 + $0x28] sm:$0xff]
  %v855 = vld [vmem:[%s848 + $0x30] sm:$0xff]
  %v856 = vld [vmem:[%s848 + $0x38] sm:$0xff]
  %v857 = vld [vmem:[%s848 + $0x40] sm:$0xff]
  %v858 = vld [vmem:[%s848 + $0x48] sm:$0xff]
  %v859 = vld [vmem:[%s848 + $0x50] sm:$0xff]
  %v860 = vld [vmem:[%s848 + $0x58] sm:$0xff]
  %v861 = vld [vmem:[%s848 + $0x60] sm:$0xff]
  %v862 = vld [vmem:[%s848 + $0x68] sm:$0xff]
  %v863 = vld [vmem:[%s848 + $0x70] sm:$0xff]
  %v864 = vld [vmem:[%s848 + $0x78] sm:$0xff]
  %865 = vmatprep.subr.mxu0 0.0
  %866 = vmatpush1.msra.mxu0 %v849
  %867 = vmatprep.subr.mxu0 0.0
  %868 = vmatpush1.msra.mxu0 %v850
  %869 = vmatprep.subr.mxu0 0.0
  %870 = vmatpush1.msra.mxu0 %v851
  %871 = vmatprep.subr.mxu0 0.0
  %872 = vmatpush1.msra.mxu0 %v852
  %873 = vmatprep.subr.mxu0 0.0
  %874 = vmatpush1.msra.mxu0 %v853
  %875 = vmatprep.subr.mxu0 0.0
  %876 = vmatpush1.msra.mxu0 %v854
  %877 = vmatprep.subr.mxu0 0.0
  %878 = vmatpush1.msra.mxu0 %v855
  %879 = vmatprep.subr.mxu0 0.0
  %880 = vmatpush1.msra.mxu0 %v856
  %881 = vmatprep.subr.mxu0 0.0
  %882 = vmatpush1.msra.mxu0 %v857
  %883 = vmatprep.subr.mxu0 0.0
  %884 = vmatpush1.msra.mxu0 %v858
  %885 = vmatprep.subr.mxu0 0.0
  %886 = vmatpush1.msra.mxu0 %v859
  %887 = vmatprep.subr.mxu0 0.0
  %888 = vmatpush1.msra.mxu0 %v860
  %889 = vmatprep.subr.mxu0 0.0
  %890 = vmatpush1.msra.mxu0 %v861
  %891 = vmatprep.subr.mxu0 0.0
  %892 = vmatpush1.msra.mxu0 %v862
  %893 = vmatprep.subr.mxu0 0.0
  %894 = vmatpush1.msra.mxu0 %v863
  %895 = vmatprep.subr.mxu0 0.0
  %896 = vmatpush1.msra.mxu0 %v864
  %897 = vmatprep.subr.mxu0 0.0
  %898 = vmatpush1.msra.mxu0 0.0
  %899 = vmatprep.subr.mxu0 0.0
  %900 = vmatpush1.msra.mxu0 0.0
  %901 = vmatprep.subr.mxu0 0.0
  %902 = vmatpush1.msra.mxu0 0.0
  %903 = vmatprep.subr.mxu0 0.0
  %904 = vmatpush1.msra.mxu0 0.0
  %905 = vmatprep.subr.mxu0 0.0
  %906 = vmatpush1.msra.mxu0 0.0
  %907 = vmatprep.subr.mxu0 0.0
  %908 = vmatpush1.msra.mxu0 0.0
  %909 = vmatprep.subr.mxu0 0.0
  %910 = vmatpush1.msra.mxu0 0.0
  %911 = vmatprep.subr.mxu0 0.0
  %912 = vmatpush1.msra.mxu0 0.0
  %913 = vmatprep.subr.mxu0 0.0
  %914 = vmatpush1.msra.mxu0 0.0
  %915 = vmatprep.subr.mxu0 0.0
  %916 = vmatpush1.msra.mxu0 0.0
  %917 = vmatprep.subr.mxu0 0.0
  %918 = vmatpush1.msra.mxu0 0.0
  %919 = vmatprep.subr.mxu0 0.0
  %920 = vmatpush1.msra.mxu0 0.0
  %921 = vmatprep.subr.mxu0 0.0
  %922 = vmatpush1.msra.mxu0 0.0
  %923 = vmatprep.subr.mxu0 0.0
  %924 = vmatpush1.msra.mxu0 0.0
  %925 = vmatprep.subr.mxu0 0.0
  %926 = vmatpush1.msra.mxu0 0.0
  %927 = vmatprep.subr.mxu0 0.0
  %928 = vmatpush1.msra.mxu0 0.0
  %929 = vmatprep.mubr.f32.mxu0 0.0
  %930 = vmatmul.mubr.f32.gmra.mrb[0].mxu0 %v804
  %v931 = vpop.f32.mrb[0].mxu0
  %v932 = vadd.f32 0.0, %v931
  %v933 = vpop.f32.mrb[0].mxu0
  %934 = vmatprep.mubr.f32.mxu0 0.0
  %935 = vmatmul.mubr.f32.gmra.mrb[0].mxu0 %v805
  %v936 = vpop.f32.mrb[0].mxu0
  %v937 = vadd.f32 0.0, %v936
  %v938 = vpop.f32.mrb[0].mxu0
  %939 = vmatprep.mubr.f32.mxu0 0.0
  %940 = vmatmul.mubr.f32.gmra.mrb[0].mxu0 %v806
  %v941 = vpop.f32.mrb[0].mxu0
  %v942 = vadd.f32 0.0, %v941
  %v943 = vpop.f32.mrb[0].mxu0
  %944 = vmatprep.mubr.f32.mxu0 0.0
  %945 = vmatmul.mubr.f32.gmra.mrb[0].mxu0 %v807
  %v946 = vpop.f32.mrb[0].mxu0
  %v947 = vadd.f32 0.0, %v946
  %v948 = vpop.f32.mrb[0].mxu0
  %949 = vdwg.mxu0
  %950 = vmatprep.subr.mxu0 0.0
  %951 = vmatpush1.msra.mxu0 %v832
  %952 = vmatprep.subr.mxu0 0.0
  %953 = vmatpush1.msra.mxu0 %v833
  %954 = vmatprep.subr.mxu0 0.0
  %955 = vmatpush1.msra.mxu0 %v834
  %956 = vmatprep.subr.mxu0 0.0
  %957 = vmatpush1.msra.mxu0 %v835
  %958 = vmatprep.subr.mxu0 0.0
  %959 = vmatpush1.msra.mxu0 %v836
  %960 = vmatprep.subr.mxu0 0.0
  %961 = vmatpush1.msra.mxu0 %v837
  %962 = vmatprep.subr.mxu0 0.0
  %963 = vmatpush1.msra.mxu0 %v838
  %964 = vmatprep.subr.mxu0 0.0
  %965 = vmatpush1.msra.mxu0 %v839
  %966 = vmatprep.subr.mxu0 0.0
  %967 = vmatpush1.msra.mxu0 %v840
  %968 = vmatprep.subr.mxu0 0.0
  %969 = vmatpush1.msra.mxu0 %v841
  %970 = vmatprep.subr.mxu0 0.0
  %971 = vmatpush1.msra.mxu0 %v842
  %972 = vmatprep.subr.mxu0 0.0
  %973 = vmatpush1.msra.mxu0 %v843
  %974 = vmatprep.subr.mxu0 0.0
  %975 = vmatpush1.msra.mxu0 %v844
  %976 = vmatprep.subr.mxu0 0.0
  %977 = vmatpush1.msra.mxu0 %v845
  %978 = vmatprep.subr.mxu0 0.0
  %979 = vmatpush1.msra.mxu0 %v846
  %980 = vmatprep.subr.mxu0 0.0
  %981 = vmatpush1.msra.mxu0 %v847
  %982 = vmatprep.subr.mxu0 0.0
  %983 = vmatpush1.msra.mxu0 0.0
  %984 = vmatprep.subr.mxu0 0.0
  %985 = vmatpush1.msra.mxu0 0.0
  %986 = vmatprep.subr.mxu0 0.0
  %987 = vmatpush1.msra.mxu0 0.0
  %988 = vmatprep.subr.mxu0 0.0
  %989 = vmatpush1.msra.mxu0 0.0
  %990 = vmatprep.subr.mxu0 0.0
  %991 = vmatpush1.msra.mxu0 0.0
  %992 = vmatprep.subr.mxu0 0.0
  %993 = vmatpush1.msra.mxu0 0.0
  %994 = vmatprep.subr.mxu0 0.0
  %995 = vmatpush1.msra.mxu0 0.0
  %996 = vmatprep.subr.mxu0 0.0
  %997 = vmatpush1.msra.mxu0 0.0
  %998 = vmatprep.subr.mxu0 0.0
  %999 = vmatpush1.msra.mxu0 0.0
  %1000 = vmatprep.subr.mxu0 0.0
  %1001 = vmatpush1.msra.mxu0 0.0
  %1002 = vmatprep.subr.mxu0 0.0
  %1003 = vmatpush1.msra.mxu0 0.0
  %1004 = vmatprep.subr.mxu0 0.0
  %1005 = vmatpush1.msra.mxu0 0.0
  %1006 = vmatprep.subr.mxu0 0.0
  %1007 = vmatpush1.msra.mxu0 0.0
  %1008 = vmatprep.subr.mxu0 0.0
  %1009 = vmatpush1.msra.mxu0 0.0
  %1010 = vmatprep.subr.mxu0 0.0
  %1011 = vmatpush1.msra.mxu0 0.0
  %1012 = vmatprep.subr.mxu0 0.0
  %1013 = vmatpush1.msra.mxu0 0.0
  %1014 = vmatprep.mubr.f32.mxu0 0.0
  %1015 = vmatmul.mubr.f32.gmra.mrb[0].mxu0 %v816
  %v1016 = vpop.f32.mrb[0].mxu0
  %v1017 = vadd.f32 %v932, %v1016
  %v1018 = vpop.f32.mrb[0].mxu0
  %1019 = vmatprep.mubr.f32.mxu0 0.0
  %1020 = vmatmul.mubr.f32.gmra.mrb[0].mxu0 %v817
  %v1021 = vpop.f32.mrb[0].mxu0
  %v1022 = vadd.f32 %v937, %v1021
  %v1023 = vpop.f32.mrb[0].mxu0
  %1024 = vmatprep.mubr.f32.mxu0 0.0
  %1025 = vmatmul.mubr.f32.gmra.mrb[0].mxu0 %v818
  %v1026 = vpop.f32.mrb[0].mxu0
  %v1027 = vadd.f32 %v942, %v1026
  %v1028 = vpop.f32.mrb[0].mxu0
  %1029 = vmatprep.mubr.f32.mxu0 0.0
  %1030 = vmatmul.mubr.f32.gmra.mrb[0].mxu0 %v819
  %v1031 = vpop.f32.mrb[0].mxu0
  %v1032 = vadd.f32 %v947, %v1031
  %v1033 = vpop.f32.mrb[0].mxu0
  %1034 = vdwg.mxu0
  %s1035 = scalar_lea.vmem %s2, 256
  %v1036 = vld [vmem:[%s1035] sm:$0xff]
  %v1037 = vld [vmem:[%s1035 + $0x8] sm:$0xff]
  %v1038 = vld [vmem:[%s1035 + $0x10] sm:$0xff]
  %v1039 = vld [vmem:[%s1035 + $0x18] sm:$0xff]
  %v1040 = vld [vmem:[%s1035 + $0x20] sm:$0xff]
  %v1041 = vld [vmem:[%s1035 + $0x28] sm:$0xff]
  %v1042 = vld [vmem:[%s1035 + $0x30] sm:$0xff]
  %v1043 = vld [vmem:[%s1035 + $0x38] sm:$0xff]
  %v1044 = vld [vmem:[%s1035 + $0x40] sm:$0xff]
  %v1045 = vld [vmem:[%s1035 + $0x48] sm:$0xff]
  %v1046 = vld [vmem:[%s1035 + $0x50] sm:$0xff]
  %v1047 = vld [vmem:[%s1035 + $0x58] sm:$0xff]
  %v1048 = vld [vmem:[%s1035 + $0x60] sm:$0xff]
  %v1049 = vld [vmem:[%s1035 + $0x68] sm:$0xff]
  %v1050 = vld [vmem:[%s1035 + $0x70] sm:$0xff]
  %v1051 = vld [vmem:[%s1035 + $0x78] sm:$0xff]
  %1052 = vmatprep.subr.mxu0 0.0
  %1053 = vmatpush1.msra.mxu0 %v1036
  %1054 = vmatprep.subr.mxu0 0.0
  %1055 = vmatpush1.msra.mxu0 %v1037
  %1056 = vmatprep.subr.mxu0 0.0
  %1057 = vmatpush1.msra.mxu0 %v1038
  %1058 = vmatprep.subr.mxu0 0.0
  %1059 = vmatpush1.msra.mxu0 %v1039
  %1060 = vmatprep.subr.mxu0 0.0
  %1061 = vmatpush1.msra.mxu0 %v1040
  %1062 = vmatprep.subr.mxu0 0.0
  %1063 = vmatpush1.msra.mxu0 %v1041
  %1064 = vmatprep.subr.mxu0 0.0
  %1065 = vmatpush1.msra.mxu0 %v1042
  %1066 = vmatprep.subr.mxu0 0.0
  %1067 = vmatpush1.msra.mxu0 %v1043
  %1068 = vmatprep.subr.mxu0 0.0
  %1069 = vmatpush1.msra.mxu0 %v1044
  %1070 = vmatprep.subr.mxu0 0.0
  %1071 = vmatpush1.msra.mxu0 %v1045
  %1072 = vmatprep.subr.mxu0 0.0
  %1073 = vmatpush1.msra.mxu0 %v1046
  %1074 = vmatprep.subr.mxu0 0.0
  %1075 = vmatpush1.msra.mxu0 %v1047
  %1076 = vmatprep.subr.mxu0 0.0
  %1077 = vmatpush1.msra.mxu0 %v1048
  %1078 = vmatprep.subr.mxu0 0.0
  %1079 = vmatpush1.msra.mxu0 %v1049
  %1080 = vmatprep.subr.mxu0 0.0
  %1081 = vmatpush1.msra.mxu0 %v1050
  %1082 = vmatprep.subr.mxu0 0.0
  %1083 = vmatpush1.msra.mxu0 %v1051
  %1084 = vmatprep.subr.mxu0 0.0
  %1085 = vmatpush1.msra.mxu0 0.0
  %1086 = vmatprep.subr.mxu0 0.0
  %1087 = vmatpush1.msra.mxu0 0.0
  %1088 = vmatprep.subr.mxu0 0.0
  %1089 = vmatpush1.msra.mxu0 0.0
  %1090 = vmatprep.subr.mxu0 0.0
  %1091 = vmatpush1.msra.mxu0 0.0
  %1092 = vmatprep.subr.mxu0 0.0
  %1093 = vmatpush1.msra.mxu0 0.0
  %1094 = vmatprep.subr.mxu0 0.0
  %1095 = vmatpush1.msra.mxu0 0.0
  %1096 = vmatprep.subr.mxu0 0.0
  %1097 = vmatpush1.msra.mxu0 0.0
  %1098 = vmatprep.subr.mxu0 0.0
  %1099 = vmatpush1.msra.mxu0 0.0
  %1100 = vmatprep.subr.mxu0 0.0
  %1101 = vmatpush1.msra.mxu0 0.0
  %1102 = vmatprep.subr.mxu0 0.0
  %1103 = vmatpush1.msra.mxu0 0.0
  %1104 = vmatprep.subr.mxu0 0.0
  %1105 = vmatpush1.msra.mxu0 0.0
  %1106 = vmatprep.subr.mxu0 0.0
  %1107 = vmatpush1.msra.mxu0 0.0
  %1108 = vmatprep.subr.mxu0 0.0
  %1109 = vmatpush1.msra.mxu0 0.0
  %1110 = vmatprep.subr.mxu0 0.0
  %1111 = vmatpush1.msra.mxu0 0.0
  %1112 = vmatprep.subr.mxu0 0.0
  %1113 = vmatpush1.msra.mxu0 0.0
  %1114 = vmatprep.subr.mxu0 0.0
  %1115 = vmatpush1.msra.mxu0 0.0
  %1116 = vmatprep.mubr.f32.mxu0 0.0
  %1117 = vmatmul.mubr.f32.gmra.mrb[0].mxu0 %v828
  %v1118 = vpop.f32.mrb[0].mxu0
  %v1119 = vadd.f32 0.0, %v1118
  %v1120 = vpop.f32.mrb[0].mxu0
  %1121 = vmatprep.mubr.f32.mxu0 0.0
  %1122 = vmatmul.mubr.f32.gmra.mrb[0].mxu0 %v829
  %v1123 = vpop.f32.mrb[0].mxu0
  %v1124 = vadd.f32 0.0, %v1123
  %v1125 = vpop.f32.mrb[0].mxu0
  %1126 = vmatprep.mubr.f32.mxu0 0.0
  %1127 = vmatmul.mubr.f32.gmra.mrb[0].mxu0 %v830
  %v1128 = vpop.f32.mrb[0].mxu0
  %v1129 = vadd.f32 0.0, %v1128
  %v1130 = vpop.f32.mrb[0].mxu0
  %1131 = vmatprep.mubr.f32.mxu0 0.0
  %1132 = vmatmul.mubr.f32.gmra.mrb[0].mxu0 %v831
  %v1133 = vpop.f32.mrb[0].mxu0
  %v1134 = vadd.f32 0.0, %v1133
  %v1135 = vpop.f32.mrb[0].mxu0
  %1136 = vdwg.mxu0
  %v1137 = vadd.f32 %v1017, %v1119
  %v1138 = vadd.f32 %v1022, %v1124
  %v1139 = vadd.f32 %v1027, %v1129
  %v1140 = vadd.f32 %v1032, %v1134
  %v1141 = vld [vmem:[%s5] sm:$0xff]
  %v1142 = vld [vmem:[%s5 + $0x8] sm:$0xff]
  %v1143 = vld [vmem:[%s5 + $0x10] sm:$0xff]
  %v1144 = vld [vmem:[%s5 + $0x18] sm:$0xff]
  %v1145 = vld [vmem:[%s5 + $0x20] sm:$0xff]
  %v1146 = vld [vmem:[%s5 + $0x28] sm:$0xff]
  %v1147 = vld [vmem:[%s5 + $0x30] sm:$0xff]
  %v1148 = vld [vmem:[%s5 + $0x38] sm:$0xff]
  %v1149 = vld [vmem:[%s5 + $0x40] sm:$0xff]
  %v1150 = vld [vmem:[%s5 + $0x48] sm:$0xff]
  %v1151 = vld [vmem:[%s5 + $0x50] sm:$0xff]
  %v1152 = vld [vmem:[%s5 + $0x58] sm:$0xff]
  %v1153 = vld [vmem:[%s5 + $0x60] sm:$0xff]
  %v1154 = vld [vmem:[%s5 + $0x68] sm:$0xff]
  %v1155 = vld [vmem:[%s5 + $0x70] sm:$0xff]
  %v1156 = vld [vmem:[%s5 + $0x78] sm:$0xff]
  %v1157 = vld [vmem:[%s6] sm:$0xff]
  %v1158 = vld [vmem:[%s9] sm:$0x1]
  %v1159 = vld [vmem:[%s10] sm:$0x1]
  %v1160 = vadd.f32 %v1137, %v1138
  %v1161 = vadd.f32 %v1160, %v1139
  %v1162 = vadd.f32 %v1161, %v1140
  %v1163 = vrot.slane %v1162, 4
  %v1164 = vadd.f32 %v1162, %v1163
  %v1165 = vrot.slane %v1164, 2
  %v1166 = vadd.f32 %v1164, %v1165
  %v1167 = vrot.slane %v1166, 1
  %v1168 = vadd.f32 %v1166, %v1167
  %v1169 = vmul.f32 %v1137, %v1137
  %v1170 = vmul.f32 %v1138, %v1138
  %v1171 = vmul.f32 %v1139, %v1139
  %v1172 = vmul.f32 %v1140, %v1140
  %v1173 = vadd.f32 %v1169, %v1170
  %v1174 = vadd.f32 %v1173, %v1171
  %v1175 = vadd.f32 %v1174, %v1172
  %v1176 = vrot.slane %v1175, 4
  %v1177 = vadd.f32 %v1175, %v1176
  %v1178 = vrot.slane %v1177, 2
  %v1179 = vadd.f32 %v1177, %v1178
  %v1180 = vrot.slane %v1179, 1
  %v1181 = vadd.f32 %v1179, %v1180
  %v1182 = vsel %vm589, %v1168, %v1181
  %1183 = vmatprep.subr.mxu0 0.0
  %1184 = vmatpush1.msra.mxu0 %v1141
  %1185 = vmatprep.subr.mxu0 0.0
  %1186 = vmatpush1.msra.mxu0 %v1142
  %1187 = vmatprep.subr.mxu0 0.0
  %1188 = vmatpush1.msra.mxu0 %v1143
  %1189 = vmatprep.subr.mxu0 0.0
  %1190 = vmatpush1.msra.mxu0 %v1144
  %1191 = vmatprep.subr.mxu0 0.0
  %1192 = vmatpush1.msra.mxu0 %v1145
  %1193 = vmatprep.subr.mxu0 0.0
  %1194 = vmatpush1.msra.mxu0 %v1146
  %1195 = vmatprep.subr.mxu0 0.0
  %1196 = vmatpush1.msra.mxu0 %v1147
  %1197 = vmatprep.subr.mxu0 0.0
  %1198 = vmatpush1.msra.mxu0 %v1148
  %1199 = vmatprep.subr.mxu0 0.0
  %1200 = vmatpush1.msra.mxu0 %v1149
  %1201 = vmatprep.subr.mxu0 0.0
  %1202 = vmatpush1.msra.mxu0 %v1150
  %1203 = vmatprep.subr.mxu0 0.0
  %1204 = vmatpush1.msra.mxu0 %v1151
  %1205 = vmatprep.subr.mxu0 0.0
  %1206 = vmatpush1.msra.mxu0 %v1152
  %1207 = vmatprep.subr.mxu0 0.0
  %1208 = vmatpush1.msra.mxu0 %v1153
  %1209 = vmatprep.subr.mxu0 0.0
  %1210 = vmatpush1.msra.mxu0 %v1154
  %1211 = vmatprep.subr.mxu0 0.0
  %1212 = vmatpush1.msra.mxu0 %v1155
  %1213 = vmatprep.subr.mxu0 0.0
  %1214 = vmatpush1.msra.mxu0 %v1156
  %1215 = vmatprep.subr.mxu0 0.0
  %1216 = vmatpush1.msra.mxu0 0.0
  %1217 = vmatprep.subr.mxu0 0.0
  %1218 = vmatpush1.msra.mxu0 0.0
  %1219 = vmatprep.subr.mxu0 0.0
  %1220 = vmatpush1.msra.mxu0 0.0
  %1221 = vmatprep.subr.mxu0 0.0
  %1222 = vmatpush1.msra.mxu0 0.0
  %1223 = vmatprep.subr.mxu0 0.0
  %1224 = vmatpush1.msra.mxu0 0.0
  %1225 = vmatprep.subr.mxu0 0.0
  %1226 = vmatpush1.msra.mxu0 0.0
  %1227 = vmatprep.subr.mxu0 0.0
  %1228 = vmatpush1.msra.mxu0 0.0
  %1229 = vmatprep.subr.mxu0 0.0
  %1230 = vmatpush1.msra.mxu0 0.0
  %1231 = vmatprep.subr.mxu0 0.0
  %1232 = vmatpush1.msra.mxu0 0.0
  %1233 = vmatprep.subr.mxu0 0.0
  %1234 = vmatpush1.msra.mxu0 0.0
  %1235 = vmatprep.subr.mxu0 0.0
  %1236 = vmatpush1.msra.mxu0 0.0
  %1237 = vmatprep.subr.mxu0 0.0
  %1238 = vmatpush1.msra.mxu0 0.0
  %1239 = vmatprep.subr.mxu0 0.0
  %1240 = vmatpush1.msra.mxu0 0.0
  %1241 = vmatprep.subr.mxu0 0.0
  %1242 = vmatpush1.msra.mxu0 0.0
  %1243 = vmatprep.subr.mxu0 0.0
  %1244 = vmatpush1.msra.mxu0 0.0
  %1245 = vmatprep.subr.mxu0 0.0
  %1246 = vmatpush1.msra.mxu0 0.0
  %1247 = vmatprep.mubr.f32.mxu0 0.0
  %1248 = vmatmul.mubr.f32.gmra.mrb[0].mxu0 %v1182
  %v1249 = vpop.f32.mrb[0].mxu0
  %v1250 = vadd.f32 0.0, %v1249
  %v1251 = vpop.f32.mrb[0].mxu0
  %1252 = vdwg.mxu0
  %v1253 = vmul.f32 %v1250, 0.001953125
  %v1254 = vmul.f32 %v1253, %v1253
  %v1256 = vrot.slane %v1254, 7
  %v1258 = vsub.f32 %v1253, %v1256
  %v1259 = vadd.f32 %v1258, 1e-05
  %v1260 = vrsqrt.pop %v1259
  %v1263 = vunpack.c.l.s4 1966171168
  %v1264 = vunpack.c.0.s8 %v1263
  %v1265 = vlaneseq
  %v1266 = vshrl.u32 %v1265, 7
  %v1267 = vsub.s32 %v1264, %v1266
  %v1268 = vrot.slane %v1260, %v1267
  %v1269 = vcombine.high %v1268, %v1268
  %v1271 = vunpack.c.l.s4 1966171168
  %v1272 = vunpack.c.0.s8 %v1271
  %v1273 = vlaneseq
  %v1274 = vshrl.u32 %v1273, 7
  %v1275 = vsub.s32 %v1272, %v1274
  %v1276 = vrot.slane %v1269, %v1275
  %v1278 = vmul.f32 %v1158, %v1276
  %v1279 = vmul.f32 %v1253, %v1278
  %v1280 = vsub.f32 %v1159, %v1279
  %v1282 = vlaneseq
  %v1283 = vshrl.u32 %v1282, 7
  %v1284 = vsub.s32 0, %v1283
  %v1285 = vrot.slane %v1280, %v1284
  %v1287 = vsel %vm589, %v1278, %v1285
  %vm1288 = vcmask 64512
  %v1290 = vsel %vm1288, %v1287, 0
  %1292 = vmatprep.subr.mxu0 0.0
  %1293 = vmatpush1.msra.mxu0 %v1157
  %1294 = vmatprep.subr.mxu0 0.0
  %1295 = vmatpush1.msra.mxu0 0.0
  %1296 = vmatprep.subr.mxu0 0.0
  %1297 = vmatpush1.msra.mxu0 0.0
  %1298 = vmatprep.subr.mxu0 0.0
  %1299 = vmatpush1.msra.mxu0 0.0
  %1300 = vmatprep.subr.mxu0 0.0
  %1301 = vmatpush1.msra.mxu0 0.0
  %1302 = vmatprep.subr.mxu0 0.0
  %1303 = vmatpush1.msra.mxu0 0.0
  %1304 = vmatprep.subr.mxu0 0.0
  %1305 = vmatpush1.msra.mxu0 0.0
  %1306 = vmatprep.subr.mxu0 0.0
  %1307 = vmatpush1.msra.mxu0 0.0
  %1308 = vmatprep.subr.mxu0 0.0
  %1309 = vmatpush1.msra.mxu0 0.0
  %1310 = vmatprep.subr.mxu0 0.0
  %1311 = vmatpush1.msra.mxu0 0.0
  %1312 = vmatprep.subr.mxu0 0.0
  %1313 = vmatpush1.msra.mxu0 0.0
  %1314 = vmatprep.subr.mxu0 0.0
  %1315 = vmatpush1.msra.mxu0 0.0
  %1316 = vmatprep.subr.mxu0 0.0
  %1317 = vmatpush1.msra.mxu0 0.0
  %1318 = vmatprep.subr.mxu0 0.0
  %1319 = vmatpush1.msra.mxu0 0.0
  %1320 = vmatprep.subr.mxu0 0.0
  %1321 = vmatpush1.msra.mxu0 0.0
  %1322 = vmatprep.subr.mxu0 0.0
  %1323 = vmatpush1.msra.mxu0 0.0
  %1324 = vmatprep.subr.mxu0 0.0
  %1325 = vmatpush1.msra.mxu0 0.0
  %1326 = vmatprep.subr.mxu0 0.0
  %1327 = vmatpush1.msra.mxu0 0.0
  %1328 = vmatprep.subr.mxu0 0.0
  %1329 = vmatpush1.msra.mxu0 0.0
  %1330 = vmatprep.subr.mxu0 0.0
  %1331 = vmatpush1.msra.mxu0 0.0
  %1332 = vmatprep.subr.mxu0 0.0
  %1333 = vmatpush1.msra.mxu0 0.0
  %1334 = vmatprep.subr.mxu0 0.0
  %1335 = vmatpush1.msra.mxu0 0.0
  %1336 = vmatprep.subr.mxu0 0.0
  %1337 = vmatpush1.msra.mxu0 0.0
  %1338 = vmatprep.subr.mxu0 0.0
  %1339 = vmatpush1.msra.mxu0 0.0
  %1340 = vmatprep.subr.mxu0 0.0
  %1341 = vmatpush1.msra.mxu0 0.0
  %1342 = vmatprep.subr.mxu0 0.0
  %1343 = vmatpush1.msra.mxu0 0.0
  %1344 = vmatprep.subr.mxu0 0.0
  %1345 = vmatpush1.msra.mxu0 0.0
  %1346 = vmatprep.subr.mxu0 0.0
  %1347 = vmatpush1.msra.mxu0 0.0
  %1348 = vmatprep.subr.mxu0 0.0
  %1349 = vmatpush1.msra.mxu0 0.0
  %1350 = vmatprep.subr.mxu0 0.0
  %1351 = vmatpush1.msra.mxu0 0.0
  %1352 = vmatprep.subr.mxu0 0.0
  %1353 = vmatpush1.msra.mxu0 0.0
  %1354 = vmatprep.subr.mxu0 0.0
  %1355 = vmatpush1.msra.mxu0 0.0
  %1356 = vmatprep.mubr.f32.mxu0 0.0
  %1357 = vmatmul.mubr.f32.gmra.mrb[0].mxu0 %v1290
  %v1358 = vpop.f32.mrb[0].mxu0
  %v1359 = vadd.f32 0.0, %v1358
  %v1360 = vpop.f32.mrb[0].mxu0
  %1361 = vdwg.mxu0
  %v1362 = vlaneseq
  %v1363 = vshrl.u32 %v1362, 7
  %v1364 = vsub.s32 0, %v1363
  %v1365 = vrot.slane %v1359, %v1364
  %v1366 = vmul.f32 %v1137, %v1365
  %v1367 = vmul.f32 %v1138, %v1365
  %v1368 = vmul.f32 %v1139, %v1365
  %v1369 = vmul.f32 %v1140, %v1365
  %v1370 = vlaneseq
  %v1371 = vshrl.u32 %v1370, 7
  %v1372 = vsub.s32 1, %v1371
  %v1373 = vrot.slane %v1359, %v1372
  %v1374 = vadd.f32 %v1366, %v1373
  %v1375 = vadd.f32 %v1367, %v1373
  %v1376 = vadd.f32 %v1368, %v1373
  %v1377 = vadd.f32 %v1369, %v1373
  %v1378 = vadd.f32 %v1374, %v797
  %v1379 = vadd.f32 %v1375, %v799
  %v1380 = vadd.f32 %v1376, %v801
  %v1381 = vadd.f32 %v1377, %v803
  %v1382 = vmax.f32 %v1378, 0.0
  %v1383 = vmax.f32 %v1379, 0.0
  %v1384 = vmax.f32 %v1380, 0.0
  %v1385 = vmax.f32 %v1381, 0.0
  %1386 = vst [vmem:[%s11] sm:$0xff] %v1382
  %1387 = vst [vmem:[%s11 + $0x8] sm:$0xff] %v1383
  %1388 = vst [vmem:[%s11 + $0x10] sm:$0xff] %v1384
  %1389 = vst [vmem:[%s11 + $0x18] sm:$0xff] %v1385
  // Predicated region
  $region46: #{residual_forward.1} parent=0 // pred_check
    _
  $region47: #{residual_forward.1} parent=0 // pred_check_branch
    %1391 = sbr.rel (0) target = $region49
  $region48: #{residual_forward.1} parent=0 // pred_region
    _
  $region49: #{residual_forward.1} parent=0 // pred_fallthru
    _
  // Predicated region
  $region50: #{residual_forward.1} parent=0 // pred_check
    _
  $region51: #{residual_forward.1} parent=0 // pred_check_branch
    %1393 = sbr.rel (0) target = $region53
  $region52: #{residual_forward.1} parent=0 // pred_region
    _
  $region53: #{residual_forward.1} parent=0 // pred_fallthru
    _

</llo_original>
